<compile_context>
chip_gen: v7x
topology: tpu7x:2x2x1
jax: 0.10.0
libtpu: 0.0.40
codegen_flags: <defaults>
</compile_context>

<pallas_src>
from functools import partial

import jax
import jax.numpy as jnp
from jax.experimental import pallas as pl
from jax.experimental.pallas import tpu as pltpu

# static backbone config (stand-in for AlexNet stages)
C1, C2 = 16, 32
KH, KW = 3, 3
NUM_HEAD_CH = 7          # loc(4) + cls1(2) + cls2(1)
NH_PAD = 8               # head channels padded to a sublane multiple


def _round_up(x, m):
    return (x + m - 1) // m * m


# ---------------------------------------------------------------------------
# Pallas kernel 1: single-pass matmul + bias (+ReLU)
#   full-K block per (i, j) tile, bf16 operands, f32 accumulation, bf16 store
# ---------------------------------------------------------------------------
def _mm_kernel(x_ref, w_ref, b_ref, o_ref, *, relu):
    acc = jnp.dot(x_ref[...], w_ref[...], preferred_element_type=jnp.float32)
    out = acc + b_ref[...]
    if relu:
        out = jnp.maximum(out, 0.0)
    o_ref[...] = out.astype(o_ref.dtype)


def matmul_bias(x, wp, bp, *, out_n, relu=False, tm=256, tn=128):
    """x: (M, K) bf16 (un-padded K), wp: (K, Np) bf16, bp: (1, Np) f32 -> (M, out_n) bf16."""
    M, K = x.shape
    Np = wp.shape[1]
    Mp = _round_up(M, tm)
    if Mp != M:
        x = jnp.pad(x, ((0, Mp - M), (0, 0)))          # pad only M; K stays raw (27 / 144)

    grid = (Mp // tm, Np // tn)
    cost = pl.CostEstimate(
        flops=int(2 * Mp * Np * K),
        transcendentals=0,
        bytes_accessed=int(Mp * K * 2 + K * Np * 2 + Np * 4 + Mp * Np * 2),
    )
    out = pl.pallas_call(
        partial(_mm_kernel, relu=relu),
        out_shape=jax.ShapeDtypeStruct((Mp, Np), jnp.bfloat16),
        grid=grid,
        in_specs=[
            pl.BlockSpec((tm, K), lambda i, j: (i, 0)),   # K block == full array dim
            pl.BlockSpec((K, tn), lambda i, j: (0, j)),
            pl.BlockSpec((1, tn), lambda i, j: (0, j)),
        ],
        out_specs=pl.BlockSpec((tm, tn), lambda i, j: (i, j)),
        compiler_params=pltpu.CompilerParams(
            dimension_semantics=("parallel", "parallel"),
            vmem_limit_bytes=32 * 1024 * 1024),
        cost_estimate=cost,
    )(x, wp, bp)
    return out[:M, :out_n]


# ---------------------------------------------------------------------------
# Pallas kernel 2: fused depthwise cross-correlation + 1x1 head
#   layout: sublane axis = C, lane axis = Ho*Wo (padded to 128)
# ---------------------------------------------------------------------------
def _xcorr_head_kernel(z_ref, xu_ref, hwT_ref, hb_ref, o_ref, *, nterms):
    # z_ref:  (C, T)     template features (bf16), T = Hz*Wz
    # xu_ref: (T, C, Lp) unfolded search features (bf16), Lp = padded Ho*Wo
    # hwT_ref:(NH, C)    head weights (transposed, zero-padded rows), f32
    # hb_ref: (NH, 1)    head bias, f32
    # o_ref:  (NH, Lp)   head logits
    zv = z_ref[...].astype(jnp.float32)                 # single explicit upcast (v5e-safe)
    nchains = 4                                         # independent partial accumulators
    partials = []
    for c0 in range(nchains):
        acc = None
        for t in range(c0, nterms, nchains):
            term = xu_ref[t].astype(jnp.float32) * zv[:, t:t + 1]   # (C, Lp)
            acc = term if acc is None else acc + term
        if acc is not None:
            partials.append(acc)
    acc = partials[0]
    for p in partials[1:]:
        acc = acc + p                                   # depthwise xcorr, f32
    heads = jnp.dot(hwT_ref[...], acc, preferred_element_type=jnp.float32)
    o_ref[...] = (heads + hb_ref[...]).astype(o_ref.dtype)


def xcorr_head(zr, xu, hwT, hb):
    """zr: (B,C,T) bf16, xu: (B,T,C,Lp) bf16, hwT: (NH,C) f32, hb: (NH,1) f32 -> (B,NH,Lp) f32."""
    B, C, T = zr.shape
    Lp = xu.shape[-1]
    NH = hwT.shape[0]
    cost = pl.CostEstimate(
        flops=int(2 * B * (T * C * Lp + NH * C * Lp)),
        transcendentals=0,
        bytes_accessed=int(B * C * T * 2 + B * T * C * Lp * 2 + NH * C * 4 + NH * 4
                           + B * NH * Lp * 4),
    )
    return pl.pallas_call(
        partial(_xcorr_head_kernel, nterms=T),
        out_shape=jax.ShapeDtypeStruct((B, NH, Lp), jnp.float32),
        grid=(B,),
        in_specs=[
            pl.BlockSpec((None, C, T), lambda b: (b, 0, 0)),
            pl.BlockSpec((None, T, C, Lp), lambda b: (b, 0, 0, 0)),
            pl.BlockSpec((NH, C), lambda b: (0, 0)),
            pl.BlockSpec((NH, 1), lambda b: (0, 0)),
        ],
        out_specs=pl.BlockSpec((None, NH, Lp), lambda b: (b, 0, 0)),
        compiler_params=pltpu.CompilerParams(
            dimension_semantics=("parallel",),
            vmem_limit_bytes=32 * 1024 * 1024),
        cost_estimate=cost,
    )(zr, xu, hwT, hb)


# ---------------------------------------------------------------------------
# Conv-as-matmul glue (NHWC bf16, im2col in plain JAX, matmul in Pallas)
# ---------------------------------------------------------------------------
def _im2col_nhwc(x, kh, kw, stride):
    """x: (B, H, W, C) -> (B*Ho*Wo, kh*kw*C), feature index = (i*kw + j)*C + c."""
    B, H, W, C = x.shape
    Ho = (H - kh) // stride + 1
    Wo = (W - kw) // stride + 1
    cols = [x[:, i:i + stride * Ho:stride, j:j + stride * Wo:stride, :]
            for i in range(kh) for j in range(kw)]
    patches = jnp.concatenate(cols, axis=-1)            # (B, Ho, Wo, kh*kw*C)
    return patches.reshape(B * Ho * Wo, kh * kw * C), Ho, Wo


def conv2d_multi(feats, wp, bp, cout, stride, relu):
    """Apply one conv (pre-packed (K, Np) weights) to several NHWC maps via ONE Pallas matmul."""
    mats, metas = [], []
    for f in feats:
        m, Ho, Wo = _im2col_nhwc(f, KH, KW, stride)
        mats.append(m)
        metas.append((f.shape[0], Ho, Wo))
    A = jnp.concatenate(mats, axis=0) if len(mats) > 1 else mats[0]
    out = matmul_bias(A, wp, bp, out_n=cout, relu=relu)
    res, off = [], 0
    for (B, Ho, Wo) in metas:
        n = B * Ho * Wo
        res.append(out[off:off + n].reshape(B, Ho, Wo, cout))
        off += n
    return res


# ---------------------------------------------------------------------------
# Params: raw (for the f32 reference) + one-time packed kernel weights
# ---------------------------------------------------------------------------
def init_params(key):
    k = jax.random.split(key, 6)
    return {
        "conv1_w": 0.10 * jax.random.normal(k[0], (C1, 3, KH, KW), jnp.float32),
        "conv1_b": 0.05 * jax.random.normal(k[1], (C1,), jnp.float32),
        "conv2_w": 0.10 * jax.random.normal(k[2], (C2, C1, KH, KW), jnp.float32),
        "conv2_b": 0.05 * jax.random.normal(k[3], (C2,), jnp.float32),
        # head: 1x1 conv producing loc(4) + cls1(2) + cls2(1) = 7 channels
        "head_w": 0.10 * jax.random.normal(k[4], (C2, NUM_HEAD_CH), jnp.float32),
        "head_b": 0.05 * jax.random.normal(k[5], (NUM_HEAD_CH,), jnp.float32),
    }


def pack_params(params):
    """Transpose / pad / bf16-cast all weights once (hoisted out of the forward)."""
    def pack_conv(w, b):
        cout, cin, kh, kw = w.shape
        K = kh * kw * cin
        Np = _round_up(cout, 128)
        w2 = jnp.transpose(w, (2, 3, 1, 0)).reshape(K, cout).astype(jnp.bfloat16)
        wp = jnp.zeros((K, Np), jnp.bfloat16).at[:, :cout].set(w2)
        bp = jnp.zeros((1, Np), jnp.float32).at[0, :cout].set(b.astype(jnp.float32))
        return wp, bp

    w1, b1 = pack_conv(params["conv1_w"], params["conv1_b"])
    w2, b2 = pack_conv(params["conv2_w"], params["conv2_b"])
    hwT = jnp.zeros((NH_PAD, C2), jnp.float32).at[:NUM_HEAD_CH, :].set(params["head_w"].T)
    hb = jnp.zeros((NH_PAD, 1), jnp.float32).at[:NUM_HEAD_CH, 0].set(params["head_b"])
    return {"conv1_w": w1, "conv1_b": b1, "conv2_w": w2, "conv2_b": b2,
            "head_wT": hwT, "head_b": hb}


# ---------------------------------------------------------------------------
# ModelBuilder.forward
# ---------------------------------------------------------------------------
def backbone_pair(packed, x_nhwc, z_nhwc):
    # AlexNet-style stand-in: conv(3x3, s2)+ReLU, conv(3x3, s1)+ReLU.
    # Both branches share weights -> one Pallas matmul per layer over the concatenated M axis.
    feats = [x_nhwc, z_nhwc]
    feats = conv2d_multi(feats, packed["conv1_w"], packed["conv1_b"], C1, stride=2, relu=True)
    feats = conv2d_multi(feats, packed["conv2_w"], packed["conv2_b"], C2, stride=1, relu=True)
    return feats[0], feats[1]


def grader(packed, xf, zf):
    """xf: (B, Hx, Wx, C), zf: (B, Hz, Wz, C) NHWC bf16 -> (loc, cls1, cls2) NCHW f32."""
    B, Hx, Wx, C = xf.shape
    _, Hz, Wz, _ = zf.shape
    Ho, Wo = Hx - Hz + 1, Wx - Wz + 1
    L = Ho * Wo
    Lp = _round_up(L, 128)
    T = Hz * Wz

    # Unfold search features directly in (B, T, C, L) layout, bf16 (no 5-D transpose,
    # no f32 round trip): xu[b, p*Wz+q, c, ho*Wo+wo] = xf[b, ho+p, wo+q, c]
    xf_c = jnp.transpose(xf, (0, 3, 1, 2))                          # (B, C, Hx, Wx), small
    cols = [xf_c[:, :, p:p + Ho, q:q + Wo] for p in range(Hz) for q in range(Wz)]
    xu = jnp.stack(cols, axis=1).reshape(B, T, C, L)                # (B, T, C, L) bf16
    xu = jnp.pad(xu, ((0, 0), (0, 0), (0, 0), (0, Lp - L)))         # lane-dense 128

    zr = jnp.transpose(zf.reshape(B, T, C), (0, 2, 1))              # (B, C, T) bf16

    heads = xcorr_head(zr, xu, packed["head_wT"], packed["head_b"])  # (B, NH, Lp) f32, fused
    heads = heads[:, :NUM_HEAD_CH, :L].reshape(B, NUM_HEAD_CH, Ho, Wo)   # NCHW like PyTorch
    return heads[:, 0:4], heads[:, 4:6], heads[:, 6:7]


def model_builder_forward(packed, x, z):
    # x, z are NCHW (PyTorch convention); go channels-last + bf16 once and stay that way.
    x_nhwc = jnp.transpose(x, (0, 2, 3, 1)).astype(jnp.bfloat16)
    z_nhwc = jnp.transpose(z, (0, 2, 3, 1)).astype(jnp.bfloat16)
    xf, zf = backbone_pair(packed, x_nhwc, z_nhwc)
    loc, cls1, cls2 = grader(packed, xf, zf)
    return {"cls1": cls1, "cls2": cls2, "loc": loc}


# ---------------------------------------------------------------------------
# Pure-JAX f32 reference (correctness spot-check)
# ---------------------------------------------------------------------------
def _conv_ref(x, w, b, stride, relu):
    out = jax.lax.conv_general_dilated(
        x, w, (stride, stride), "VALID",
        dimension_numbers=("NCHW", "OIHW", "NCHW"))
    out = out + b[None, :, None, None]
    return jnp.maximum(out, 0.0) if relu else out


def _xcorr_ref(xf, zf):
    B, C, Hx, Wx = xf.shape
    _, _, Hz, Wz = zf.shape
    Ho, Wo = Hx - Hz + 1, Wx - Wz + 1
    out = jnp.zeros((B, C, Ho, Wo), jnp.float32)
    for p in range(Hz):
        for q in range(Wz):
            out = out + xf[:, :, p:p + Ho, q:q + Wo] * zf[:, :, p:p + 1, q:q + 1]
    return out


def _forward_ref(params, x, z):
    def bb(v):
        h = _conv_ref(v, params["conv1_w"], params["conv1_b"], 2, True)
        return _conv_ref(h, params["conv2_w"], params["conv2_b"], 1, True)
    zf, xf = bb(z), bb(x)
    corr = _xcorr_ref(xf, zf)
    heads = jnp.einsum("bchw,cn->bnhw", corr, params["head_w"]) \
        + params["head_b"][None, :, None, None]
    return {"cls1": heads[:, 4:6], "cls2": heads[:, 6:7], "loc": heads[:, 0:4]}


# ---------------------------------------------------------------------------
if __name__ == "__main__":
    key = jax.random.PRNGKey(0)
    kp, kx, kz = jax.random.split(key, 3)
    params = init_params(kp)
    packed = pack_params(params)          # one-time weight packing (not inside the forward)

    # search image x and template image z (NCHW, like PyTorch)
    x = jax.random.normal(kx, (2, 3, 32, 32), jnp.float32)
    z = jax.random.normal(kz, (2, 3, 16, 16), jnp.float32)

    fwd = jax.jit(partial(model_builder_forward, packed))
    out = jax.block_until_ready(fwd(x, z))
    ref = jax.block_until_ready(_forward_ref(params, x, z))

    assert out["loc"].shape == (2, 4, 9, 9)
    assert out["cls1"].shape == (2, 2, 9, 9)
    assert out["cls2"].shape == (2, 1, 9, 9)
    # bf16 activations + bf16 MXU operands -> compare with combined abs/rel tolerance
    for name in ("loc", "cls1", "cls2"):
        if not bool(jnp.allclose(out[name], ref[name], rtol=5e-2, atol=5e-2)):
            err = jnp.max(jnp.abs(out[name] - ref[name]))
            raise AssertionError(f"{name} mismatch, max abs err = {err}")

    print("KERNEL_OK")
</pallas_src>

<mosaic_0001>
module attributes {stable_mosaic.version = 11 : i64} {
  func.func @_mm_kernel(%arg0: i32, %arg1: i32, %arg2: memref<256x27xbf16, #tpu.memory_space<vmem>>, %arg3: memref<27x128xbf16, #tpu.memory_space<vmem>>, %arg4: memref<1x128xf32, #tpu.memory_space<vmem>>, %arg5: memref<256x128xbf16, #tpu.memory_space<vmem>>) attributes {dimension_semantics = [#tpu.dimension_semantics<parallel>, #tpu.dimension_semantics<parallel>], iteration_bounds = array<i64: 3, 1>, scalar_prefetch = 0 : i64, scratch_operands = 0 : i64, tpu.core_type = #tpu.core_type<tc>, window_params = [{transform_indices = @transform_0, window_bounds = array<i64: 256, 27>}, {transform_indices = @transform_1, window_bounds = array<i64: 27, 128>}, {transform_indices = @transform_2, window_bounds = array<i64: 1, 128>}, {transform_indices = @transform_3, window_bounds = array<i64: 256, 128>}]} {
    %c0 = arith.constant 0 : index
    %c0_0 = arith.constant 0 : index
    %0 = vector.load %arg2[%c0, %c0_0] : memref<256x27xbf16, #tpu.memory_space<vmem>>, vector<256x27xbf16>
    %c0_1 = arith.constant 0 : index
    %c0_2 = arith.constant 0 : index
    %1 = vector.load %arg3[%c0_1, %c0_2] : memref<27x128xbf16, #tpu.memory_space<vmem>>, vector<27x128xbf16>
    %cst = arith.constant dense<0.000000e+00> : vector<256x128xf32>
    %2 = tpu.matmul %0, %1, %cst {dimension_numbers = #tpu.dot_dimension_numbers<[1], [0], [0], [1], [0, 0, 1, 1], [], []>} : vector<256x27xbf16>, vector<27x128xbf16>, vector<256x128xf32> -> vector<256x128xf32>
    %c0_3 = arith.constant 0 : index
    %c0_4 = arith.constant 0 : index
    %3 = vector.load %arg4[%c0_3, %c0_4] : memref<1x128xf32, #tpu.memory_space<vmem>>, vector<1x128xf32>
    %4 = vector.broadcast %3 : vector<1x128xf32> to vector<256x128xf32>
    %5 = arith.addf %2, %4 : vector<256x128xf32>
    %cst_5 = arith.constant 0.000000e+00 : f32
    %6 = vector.broadcast %cst_5 : f32 to vector<256x128xf32>
    %7 = arith.maximumf %5, %6 : vector<256x128xf32>
    %8 = arith.truncf %7 : vector<256x128xf32> to vector<256x128xbf16>
    %c0_6 = arith.constant 0 : index
    %c0_7 = arith.constant 0 : index
    %9 = vector.load %arg5[%c0_6, %c0_7] : memref<256x128xbf16, #tpu.memory_space<vmem>>, vector<256x128xbf16>
    tpu.vector_store %arg5[%c0_6, %c0_7], %8 {strides = array<i32>} : memref<256x128xbf16, #tpu.memory_space<vmem>>, vector<256x128xbf16>,
    return
  }
  func.func @transform_0(%arg0: i32, %arg1: i32) -> (i32, i32) {
    %c0_i32 = arith.constant 0 : i32
    %c0_i32_0 = arith.constant 0 : i32
    return %arg0, %c0_i32 : i32, i32
  }
  func.func @transform_1(%arg0: i32, %arg1: i32) -> (i32, i32) {
    %c0_i32 = arith.constant 0 : i32
    %c0_i32_0 = arith.constant 0 : i32
    return %c0_i32, %arg1 : i32, i32
  }
  func.func @transform_2(%arg0: i32, %arg1: i32) -> (i32, i32) {
    %c0_i32 = arith.constant 0 : i32
    %c0_i32_0 = arith.constant 0 : i32
    return %c0_i32, %arg1 : i32, i32
  }
  func.func @transform_3(%arg0: i32, %arg1: i32) -> (i32, i32) {
    %c0_i32 = arith.constant 0 : i32
    return %arg0, %arg1 : i32, i32
  }
}

module attributes {stable_mosaic.version = 11 : i64} {
  func.func @_mm_kernel(%arg0: i32, %arg1: i32, %arg2: memref<256x144xbf16, #tpu.memory_space<vmem>>, %arg3: memref<144x128xbf16, #tpu.memory_space<vmem>>, %arg4: memref<1x128xf32, #tpu.memory_space<vmem>>, %arg5: memref<256x128xbf16, #tpu.memory_space<vmem>>) attributes {dimension_semantics = [#tpu.dimension_semantics<parallel>, #tpu.dimension_semantics<parallel>], iteration_bounds = array<i64: 2, 1>, scalar_prefetch = 0 : i64, scratch_operands = 0 : i64, tpu.core_type = #tpu.core_type<tc>, window_params = [{transform_indices = @transform_0, window_bounds = array<i64: 256, 144>}, {transform_indices = @transform_1, window_bounds = array<i64: 144, 128>}, {transform_indices = @transform_2, window_bounds = array<i64: 1, 128>}, {transform_indices = @transform_3, window_bounds = array<i64: 256, 128>}]} {
    %c0 = arith.constant 0 : index
    %c0_0 = arith.constant 0 : index
    %0 = vector.load %arg2[%c0, %c0_0] : memref<256x144xbf16, #tpu.memory_space<vmem>>, vector<256x144xbf16>
    %c0_1 = arith.constant 0 : index
    %c0_2 = arith.constant 0 : index
    %1 = vector.load %arg3[%c0_1, %c0_2] : memref<144x128xbf16, #tpu.memory_space<vmem>>, vector<144x128xbf16>
    %cst = arith.constant dense<0.000000e+00> : vector<256x128xf32>
    %2 = tpu.matmul %0, %1, %cst {dimension_numbers = #tpu.dot_dimension_numbers<[1], [0], [0], [1], [0, 0, 1, 1], [], []>} : vector<256x144xbf16>, vector<144x128xbf16>, vector<256x128xf32> -> vector<256x128xf32>
    %c0_3 = arith.constant 0 : index
    %c0_4 = arith.constant 0 : index
    %3 = vector.load %arg4[%c0_3, %c0_4] : memref<1x128xf32, #tpu.memory_space<vmem>>, vector<1x128xf32>
    %4 = vector.broadcast %3 : vector<1x128xf32> to vector<256x128xf32>
    %5 = arith.addf %2, %4 : vector<256x128xf32>
    %cst_5 = arith.constant 0.000000e+00 : f32
    %6 = vector.broadcast %cst_5 : f32 to vector<256x128xf32>
    %7 = arith.maximumf %5, %6 : vector<256x128xf32>
    %8 = arith.truncf %7 : vector<256x128xf32> to vector<256x128xbf16>
    %c0_6 = arith.constant 0 : index
    %c0_7 = arith.constant 0 : index
    %9 = vector.load %arg5[%c0_6, %c0_7] : memref<256x128xbf16, #tpu.memory_space<vmem>>, vector<256x128xbf16>
    tpu.vector_store %arg5[%c0_6, %c0_7], %8 {strides = array<i32>} : memref<256x128xbf16, #tpu.memory_space<vmem>>, vector<256x128xbf16>,
    return
  }
  func.func @transform_0(%arg0: i32, %arg1: i32) -> (i32, i32) {
    %c0_i32 = arith.constant 0 : i32
    %c0_i32_0 = arith.constant 0 : i32
    return %arg0, %c0_i32 : i32, i32
  }
  func.func @transform_1(%arg0: i32, %arg1: i32) -> (i32, i32) {
    %c0_i32 = arith.constant 0 : i32
    %c0_i32_0 = arith.constant 0 : i32
    return %c0_i32, %arg1 : i32, i32
  }
  func.func @transform_2(%arg0: i32, %arg1: i32) -> (i32, i32) {
    %c0_i32 = arith.constant 0 : i32
    %c0_i32_0 = arith.constant 0 : i32
    return %c0_i32, %arg1 : i32, i32
  }
  func.func @transform_3(%arg0: i32, %arg1: i32) -> (i32, i32) {
    %c0_i32 = arith.constant 0 : i32
    return %arg0, %arg1 : i32, i32
  }
}

module attributes {stable_mosaic.version = 11 : i64} {
  func.func @_xcorr_head_kernel(%arg0: i32, %arg1: memref<1x32x25xbf16, #tpu.memory_space<vmem>>, %arg2: memref<1x25x32x128xbf16, #tpu.memory_space<vmem>>, %arg3: memref<8x32xf32, #tpu.memory_space<vmem>>, %arg4: memref<8x1xf32, #tpu.memory_space<vmem>>, %arg5: memref<1x8x128xf32, #tpu.memory_space<vmem>>) attributes {dimension_semantics = [#tpu.dimension_semantics<parallel>], iteration_bounds = array<i64: 2>, scalar_prefetch = 0 : i64, scratch_operands = 0 : i64, tpu.core_type = #tpu.core_type<tc>, window_params = [{transform_indices = @transform_0, window_bounds = array<i64: 1, 32, 25>}, {transform_indices = @transform_1, window_bounds = array<i64: 1, 25, 32, 128>}, {pipeline_mode = #tpu.pipeline_mode<synchronous>, transform_indices = @transform_2, window_bounds = array<i64: 8, 32>}, {pipeline_mode = #tpu.pipeline_mode<synchronous>, transform_indices = @transform_3, window_bounds = array<i64: 8, 1>}, {transform_indices = @transform_4, window_bounds = array<i64: 1, 8, 128>}]} {
    %c0 = arith.constant 0 : index
    %c0_0 = arith.constant 0 : index
    %c0_1 = arith.constant 0 : index
    %0 = vector.load %arg1[%c0, %c0_0, %c0_1] : memref<1x32x25xbf16, #tpu.memory_space<vmem>>, vector<1x32x25xbf16>
    %1 = vector.shape_cast %0 : vector<1x32x25xbf16> to vector<32x25xbf16>
    %2 = arith.extf %1 : vector<32x25xbf16> to vector<32x25xf32>
    %c0_2 = arith.constant 0 : index
    %c0_3 = arith.constant 0 : index
    %c0_4 = arith.constant 0 : index
    %c0_5 = arith.constant 0 : index
    %3 = vector.load %arg2[%c0_2, %c0_3, %c0_4, %c0_5] : memref<1x25x32x128xbf16, #tpu.memory_space<vmem>>, vector<1x1x32x128xbf16>
    %4 = vector.shape_cast %3 : vector<1x1x32x128xbf16> to vector<32x128xbf16>
    %5 = arith.extf %4 : vector<32x128xbf16> to vector<32x128xf32>
    %6 = vector.extract_strided_slice %2 {offsets = [0, 0], sizes = [32, 1], strides = [1, 1]} : vector<32x25xf32> to vector<32x1xf32>
    %7 = vector.broadcast %6 : vector<32x1xf32> to vector<32x128xf32>
    %8 = arith.mulf %5, %7 : vector<32x128xf32>
    %c0_6 = arith.constant 0 : index
    %c4 = arith.constant 4 : index
    %c0_7 = arith.constant 0 : index
    %c0_8 = arith.constant 0 : index
    %9 = vector.load %arg2[%c0_6, %c4, %c0_7, %c0_8] : memref<1x25x32x128xbf16, #tpu.memory_space<vmem>>, vector<1x1x32x128xbf16>
    %10 = vector.shape_cast %9 : vector<1x1x32x128xbf16> to vector<32x128xbf16>
    %11 = arith.extf %10 : vector<32x128xbf16> to vector<32x128xf32>
    %12 = vector.extract_strided_slice %2 {offsets = [0, 4], sizes = [32, 1], strides = [1, 1]} : vector<32x25xf32> to vector<32x1xf32>
    %13 = vector.broadcast %12 : vector<32x1xf32> to vector<32x128xf32>
    %14 = arith.mulf %11, %13 : vector<32x128xf32>
    %15 = arith.addf %8, %14 : vector<32x128xf32>
    %c0_9 = arith.constant 0 : index
    %c8 = arith.constant 8 : index
    %c0_10 = arith.constant 0 : index
    %c0_11 = arith.constant 0 : index
    %16 = vector.load %arg2[%c0_9, %c8, %c0_10, %c0_11] : memref<1x25x32x128xbf16, #tpu.memory_space<vmem>>, vector<1x1x32x128xbf16>
    %17 = vector.shape_cast %16 : vector<1x1x32x128xbf16> to vector<32x128xbf16>
    %18 = arith.extf %17 : vector<32x128xbf16> to vector<32x128xf32>
    %19 = vector.extract_strided_slice %2 {offsets = [0, 8], sizes = [32, 1], strides = [1, 1]} : vector<32x25xf32> to vector<32x1xf32>
    %20 = vector.broadcast %19 : vector<32x1xf32> to vector<32x128xf32>
    %21 = arith.mulf %18, %20 : vector<32x128xf32>
    %22 = arith.addf %15, %21 : vector<32x128xf32>
    %c0_12 = arith.constant 0 : index
    %c12 = arith.constant 12 : index
    %c0_13 = arith.constant 0 : index
    %c0_14 = arith.constant 0 : index
    %23 = vector.load %arg2[%c0_12, %c12, %c0_13, %c0_14] : memref<1x25x32x128xbf16, #tpu.memory_space<vmem>>, vector<1x1x32x128xbf16>
    %24 = vector.shape_cast %23 : vector<1x1x32x128xbf16> to vector<32x128xbf16>
    %25 = arith.extf %24 : vector<32x128xbf16> to vector<32x128xf32>
    %26 = vector.extract_strided_slice %2 {offsets = [0, 12], sizes = [32, 1], strides = [1, 1]} : vector<32x25xf32> to vector<32x1xf32>
    %27 = vector.broadcast %26 : vector<32x1xf32> to vector<32x128xf32>
    %28 = arith.mulf %25, %27 : vector<32x128xf32>
    %29 = arith.addf %22, %28 : vector<32x128xf32>
    %c0_15 = arith.constant 0 : index
    %c16 = arith.constant 16 : index
    %c0_16 = arith.constant 0 : index
    %c0_17 = arith.constant 0 : index
    %30 = vector.load %arg2[%c0_15, %c16, %c0_16, %c0_17] : memref<1x25x32x128xbf16, #tpu.memory_space<vmem>>, vector<1x1x32x128xbf16>
    %31 = vector.shape_cast %30 : vector<1x1x32x128xbf16> to vector<32x128xbf16>
    %32 = arith.extf %31 : vector<32x128xbf16> to vector<32x128xf32>
    %33 = vector.extract_strided_slice %2 {offsets = [0, 16], sizes = [32, 1], strides = [1, 1]} : vector<32x25xf32> to vector<32x1xf32>
    %34 = vector.broadcast %33 : vector<32x1xf32> to vector<32x128xf32>
    %35 = arith.mulf %32, %34 : vector<32x128xf32>
    %36 = arith.addf %29, %35 : vector<32x128xf32>
    %c0_18 = arith.constant 0 : index
    %c20 = arith.constant 20 : index
    %c0_19 = arith.constant 0 : index
    %c0_20 = arith.constant 0 : index
    %37 = vector.load %arg2[%c0_18, %c20, %c0_19, %c0_20] : memref<1x25x32x128xbf16, #tpu.memory_space<vmem>>, vector<1x1x32x128xbf16>
    %38 = vector.shape_cast %37 : vector<1x1x32x128xbf16> to vector<32x128xbf16>
    %39 = arith.extf %38 : vector<32x128xbf16> to vector<32x128xf32>
    %40 = vector.extract_strided_slice %2 {offsets = [0, 20], sizes = [32, 1], strides = [1, 1]} : vector<32x25xf32> to vector<32x1xf32>
    %41 = vector.broadcast %40 : vector<32x1xf32> to vector<32x128xf32>
    %42 = arith.mulf %39, %41 : vector<32x128xf32>
    %43 = arith.addf %36, %42 : vector<32x128xf32>
    %c0_21 = arith.constant 0 : index
    %c24 = arith.constant 24 : index
    %c0_22 = arith.constant 0 : index
    %c0_23 = arith.constant 0 : index
    %44 = vector.load %arg2[%c0_21, %c24, %c0_22, %c0_23] : memref<1x25x32x128xbf16, #tpu.memory_space<vmem>>, vector<1x1x32x128xbf16>
    %45 = vector.shape_cast %44 : vector<1x1x32x128xbf16> to vector<32x128xbf16>
    %46 = arith.extf %45 : vector<32x128xbf16> to vector<32x128xf32>
    %47 = vector.extract_strided_slice %2 {offsets = [0, 24], sizes = [32, 1], strides = [1, 1]} : vector<32x25xf32> to vector<32x1xf32>
    %48 = vector.broadcast %47 : vector<32x1xf32> to vector<32x128xf32>
    %49 = arith.mulf %46, %48 : vector<32x128xf32>
    %50 = arith.addf %43, %49 : vector<32x128xf32>
    %c0_24 = arith.constant 0 : index
    %c1 = arith.constant 1 : index
    %c0_25 = arith.constant 0 : index
    %c0_26 = arith.constant 0 : index
    %51 = vector.load %arg2[%c0_24, %c1, %c0_25, %c0_26] : memref<1x25x32x128xbf16, #tpu.memory_space<vmem>>, vector<1x1x32x128xbf16>
    %52 = vector.shape_cast %51 : vector<1x1x32x128xbf16> to vector<32x128xbf16>
    %53 = arith.extf %52 : vector<32x128xbf16> to vector<32x128xf32>
    %54 = vector.extract_strided_slice %2 {offsets = [0, 1], sizes = [32, 1], strides = [1, 1]} : vector<32x25xf32> to vector<32x1xf32>
    %55 = vector.broadcast %54 : vector<32x1xf32> to vector<32x128xf32>
    %56 = arith.mulf %53, %55 : vector<32x128xf32>
    %c0_27 = arith.constant 0 : index
    %c5 = arith.constant 5 : index
    %c0_28 = arith.constant 0 : index
    %c0_29 = arith.constant 0 : index
    %57 = vector.load %arg2[%c0_27, %c5, %c0_28, %c0_29] : memref<1x25x32x128xbf16, #tpu.memory_space<vmem>>, vector<1x1x32x128xbf16>
    %58 = vector.shape_cast %57 : vector<1x1x32x128xbf16> to vector<32x128xbf16>
    %59 = arith.extf %58 : vector<32x128xbf16> to vector<32x128xf32>
    %60 = vector.extract_strided_slice %2 {offsets = [0, 5], sizes = [32, 1], strides = [1, 1]} : vector<32x25xf32> to vector<32x1xf32>
    %61 = vector.broadcast %60 : vector<32x1xf32> to vector<32x128xf32>
    %62 = arith.mulf %59, %61 : vector<32x128xf32>
    %63 = arith.addf %56, %62 : vector<32x128xf32>
    %c0_30 = arith.constant 0 : index
    %c9 = arith.constant 9 : index
    %c0_31 = arith.constant 0 : index
    %c0_32 = arith.constant 0 : index
    %64 = vector.load %arg2[%c0_30, %c9, %c0_31, %c0_32] : memref<1x25x32x128xbf16, #tpu.memory_space<vmem>>, vector<1x1x32x128xbf16>
    %65 = vector.shape_cast %64 : vector<1x1x32x128xbf16> to vector<32x128xbf16>
    %66 = arith.extf %65 : vector<32x128xbf16> to vector<32x128xf32>
    %67 = vector.extract_strided_slice %2 {offsets = [0, 9], sizes = [32, 1], strides = [1, 1]} : vector<32x25xf32> to vector<32x1xf32>
    %68 = vector.broadcast %67 : vector<32x1xf32> to vector<32x128xf32>
    %69 = arith.mulf %66, %68 : vector<32x128xf32>
    %70 = arith.addf %63, %69 : vector<32x128xf32>
    %c0_33 = arith.constant 0 : index
    %c13 = arith.constant 13 : index
    %c0_34 = arith.constant 0 : index
    %c0_35 = arith.constant 0 : index
    %71 = vector.load %arg2[%c0_33, %c13, %c0_34, %c0_35] : memref<1x25x32x128xbf16, #tpu.memory_space<vmem>>, vector<1x1x32x128xbf16>
    %72 = vector.shape_cast %71 : vector<1x1x32x128xbf16> to vector<32x128xbf16>
    %73 = arith.extf %72 : vector<32x128xbf16> to vector<32x128xf32>
    %74 = vector.extract_strided_slice %2 {offsets = [0, 13], sizes = [32, 1], strides = [1, 1]} : vector<32x25xf32> to vector<32x1xf32>
    %75 = vector.broadcast %74 : vector<32x1xf32> to vector<32x128xf32>
    %76 = arith.mulf %73, %75 : vector<32x128xf32>
    %77 = arith.addf %70, %76 : vector<32x128xf32>
    %c0_36 = arith.constant 0 : index
    %c17 = arith.constant 17 : index
    %c0_37 = arith.constant 0 : index
    %c0_38 = arith.constant 0 : index
    %78 = vector.load %arg2[%c0_36, %c17, %c0_37, %c0_38] : memref<1x25x32x128xbf16, #tpu.memory_space<vmem>>, vector<1x1x32x128xbf16>
    %79 = vector.shape_cast %78 : vector<1x1x32x128xbf16> to vector<32x128xbf16>
    %80 = arith.extf %79 : vector<32x128xbf16> to vector<32x128xf32>
    %81 = vector.extract_strided_slice %2 {offsets = [0, 17], sizes = [32, 1], strides = [1, 1]} : vector<32x25xf32> to vector<32x1xf32>
    %82 = vector.broadcast %81 : vector<32x1xf32> to vector<32x128xf32>
    %83 = arith.mulf %80, %82 : vector<32x128xf32>
    %84 = arith.addf %77, %83 : vector<32x128xf32>
    %c0_39 = arith.constant 0 : index
    %c21 = arith.constant 21 : index
    %c0_40 = arith.constant 0 : index
    %c0_41 = arith.constant 0 : index
    %85 = vector.load %arg2[%c0_39, %c21, %c0_40, %c0_41] : memref<1x25x32x128xbf16, #tpu.memory_space<vmem>>, vector<1x1x32x128xbf16>
    %86 = vector.shape_cast %85 : vector<1x1x32x128xbf16> to vector<32x128xbf16>
    %87 = arith.extf %86 : vector<32x128xbf16> to vector<32x128xf32>
    %88 = vector.extract_strided_slice %2 {offsets = [0, 21], sizes = [32, 1], strides = [1, 1]} : vector<32x25xf32> to vector<32x1xf32>
    %89 = vector.broadcast %88 : vector<32x1xf32> to vector<32x128xf32>
    %90 = arith.mulf %87, %89 : vector<32x128xf32>
    %91 = arith.addf %84, %90 : vector<32x128xf32>
    %c0_42 = arith.constant 0 : index
    %c2 = arith.constant 2 : index
    %c0_43 = arith.constant 0 : index
    %c0_44 = arith.constant 0 : index
    %92 = vector.load %arg2[%c0_42, %c2, %c0_43, %c0_44] : memref<1x25x32x128xbf16, #tpu.memory_space<vmem>>, vector<1x1x32x128xbf16>
    %93 = vector.shape_cast %92 : vector<1x1x32x128xbf16> to vector<32x128xbf16>
    %94 = arith.extf %93 : vector<32x128xbf16> to vector<32x128xf32>
    %95 = vector.extract_strided_slice %2 {offsets = [0, 2], sizes = [32, 1], strides = [1, 1]} : vector<32x25xf32> to vector<32x1xf32>
    %96 = vector.broadcast %95 : vector<32x1xf32> to vector<32x128xf32>
    %97 = arith.mulf %94, %96 : vector<32x128xf32>
    %c0_45 = arith.constant 0 : index
    %c6 = arith.constant 6 : index
    %c0_46 = arith.constant 0 : index
    %c0_47 = arith.constant 0 : index
    %98 = vector.load %arg2[%c0_45, %c6, %c0_46, %c0_47] : memref<1x25x32x128xbf16, #tpu.memory_space<vmem>>, vector<1x1x32x128xbf16>
    %99 = vector.shape_cast %98 : vector<1x1x32x128xbf16> to vector<32x128xbf16>
    %100 = arith.extf %99 : vector<32x128xbf16> to vector<32x128xf32>
    %101 = vector.extract_strided_slice %2 {offsets = [0, 6], sizes = [32, 1], strides = [1, 1]} : vector<32x25xf32> to vector<32x1xf32>
    %102 = vector.broadcast %101 : vector<32x1xf32> to vector<32x128xf32>
    %103 = arith.mulf %100, %102 : vector<32x128xf32>
    %104 = arith.addf %97, %103 : vector<32x128xf32>
    %c0_48 = arith.constant 0 : index
    %c10 = arith.constant 10 : index
    %c0_49 = arith.constant 0 : index
    %c0_50 = arith.constant 0 : index
    %105 = vector.load %arg2[%c0_48, %c10, %c0_49, %c0_50] : memref<1x25x32x128xbf16, #tpu.memory_space<vmem>>, vector<1x1x32x128xbf16>
    %106 = vector.shape_cast %105 : vector<1x1x32x128xbf16> to vector<32x128xbf16>
    %107 = arith.extf %106 : vector<32x128xbf16> to vector<32x128xf32>
    %108 = vector.extract_strided_slice %2 {offsets = [0, 10], sizes = [32, 1], strides = [1, 1]} : vector<32x25xf32> to vector<32x1xf32>
    %109 = vector.broadcast %108 : vector<32x1xf32> to vector<32x128xf32>
    %110 = arith.mulf %107, %109 : vector<32x128xf32>
    %111 = arith.addf %104, %110 : vector<32x128xf32>
    %c0_51 = arith.constant 0 : index
    %c14 = arith.constant 14 : index
    %c0_52 = arith.constant 0 : index
    %c0_53 = arith.constant 0 : index
    %112 = vector.load %arg2[%c0_51, %c14, %c0_52, %c0_53] : memref<1x25x32x128xbf16, #tpu.memory_space<vmem>>, vector<1x1x32x128xbf16>
    %113 = vector.shape_cast %112 : vector<1x1x32x128xbf16> to vector<32x128xbf16>
    %114 = arith.extf %113 : vector<32x128xbf16> to vector<32x128xf32>
    %115 = vector.extract_strided_slice %2 {offsets = [0, 14], sizes = [32, 1], strides = [1, 1]} : vector<32x25xf32> to vector<32x1xf32>
    %116 = vector.broadcast %115 : vector<32x1xf32> to vector<32x128xf32>
    %117 = arith.mulf %114, %116 : vector<32x128xf32>
    %118 = arith.addf %111, %117 : vector<32x128xf32>
    %c0_54 = arith.constant 0 : index
    %c18 = arith.constant 18 : index
    %c0_55 = arith.constant 0 : index
    %c0_56 = arith.constant 0 : index
    %119 = vector.load %arg2[%c0_54, %c18, %c0_55, %c0_56] : memref<1x25x32x128xbf16, #tpu.memory_space<vmem>>, vector<1x1x32x128xbf16>
    %120 = vector.shape_cast %119 : vector<1x1x32x128xbf16> to vector<32x128xbf16>
    %121 = arith.extf %120 : vector<32x128xbf16> to vector<32x128xf32>
    %122 = vector.extract_strided_slice %2 {offsets = [0, 18], sizes = [32, 1], strides = [1, 1]} : vector<32x25xf32> to vector<32x1xf32>
    %123 = vector.broadcast %122 : vector<32x1xf32> to vector<32x128xf32>
    %124 = arith.mulf %121, %123 : vector<32x128xf32>
    %125 = arith.addf %118, %124 : vector<32x128xf32>
    %c0_57 = arith.constant 0 : index
    %c22 = arith.constant 22 : index
    %c0_58 = arith.constant 0 : index
    %c0_59 = arith.constant 0 : index
    %126 = vector.load %arg2[%c0_57, %c22, %c0_58, %c0_59] : memref<1x25x32x128xbf16, #tpu.memory_space<vmem>>, vector<1x1x32x128xbf16>
    %127 = vector.shape_cast %126 : vector<1x1x32x128xbf16> to vector<32x128xbf16>
    %128 = arith.extf %127 : vector<32x128xbf16> to vector<32x128xf32>
    %129 = vector.extract_strided_slice %2 {offsets = [0, 22], sizes = [32, 1], strides = [1, 1]} : vector<32x25xf32> to vector<32x1xf32>
    %130 = vector.broadcast %129 : vector<32x1xf32> to vector<32x128xf32>
    %131 = arith.mulf %128, %130 : vector<32x128xf32>
    %132 = arith.addf %125, %131 : vector<32x128xf32>
    %c0_60 = arith.constant 0 : index
    %c3 = arith.constant 3 : index
    %c0_61 = arith.constant 0 : index
    %c0_62 = arith.constant 0 : index
    %133 = vector.load %arg2[%c0_60, %c3, %c0_61, %c0_62] : memref<1x25x32x128xbf16, #tpu.memory_space<vmem>>, vector<1x1x32x128xbf16>
    %134 = vector.shape_cast %133 : vector<1x1x32x128xbf16> to vector<32x128xbf16>
    %135 = arith.extf %134 : vector<32x128xbf16> to vector<32x128xf32>
    %136 = vector.extract_strided_slice %2 {offsets = [0, 3], sizes = [32, 1], strides = [1, 1]} : vector<32x25xf32> to vector<32x1xf32>
    %137 = vector.broadcast %136 : vector<32x1xf32> to vector<32x128xf32>
    %138 = arith.mulf %135, %137 : vector<32x128xf32>
    %c0_63 = arith.constant 0 : index
    %c7 = arith.constant 7 : index
    %c0_64 = arith.constant 0 : index
    %c0_65 = arith.constant 0 : index
    %139 = vector.load %arg2[%c0_63, %c7, %c0_64, %c0_65] : memref<1x25x32x128xbf16, #tpu.memory_space<vmem>>, vector<1x1x32x128xbf16>
    %140 = vector.shape_cast %139 : vector<1x1x32x128xbf16> to vector<32x128xbf16>
    %141 = arith.extf %140 : vector<32x128xbf16> to vector<32x128xf32>
    %142 = vector.extract_strided_slice %2 {offsets = [0, 7], sizes = [32, 1], strides = [1, 1]} : vector<32x25xf32> to vector<32x1xf32>
    %143 = vector.broadcast %142 : vector<32x1xf32> to vector<32x128xf32>
    %144 = arith.mulf %141, %143 : vector<32x128xf32>
    %145 = arith.addf %138, %144 : vector<32x128xf32>
    %c0_66 = arith.constant 0 : index
    %c11 = arith.constant 11 : index
    %c0_67 = arith.constant 0 : index
    %c0_68 = arith.constant 0 : index
    %146 = vector.load %arg2[%c0_66, %c11, %c0_67, %c0_68] : memref<1x25x32x128xbf16, #tpu.memory_space<vmem>>, vector<1x1x32x128xbf16>
    %147 = vector.shape_cast %146 : vector<1x1x32x128xbf16> to vector<32x128xbf16>
    %148 = arith.extf %147 : vector<32x128xbf16> to vector<32x128xf32>
    %149 = vector.extract_strided_slice %2 {offsets = [0, 11], sizes = [32, 1], strides = [1, 1]} : vector<32x25xf32> to vector<32x1xf32>
    %150 = vector.broadcast %149 : vector<32x1xf32> to vector<32x128xf32>
    %151 = arith.mulf %148, %150 : vector<32x128xf32>
    %152 = arith.addf %145, %151 : vector<32x128xf32>
    %c0_69 = arith.constant 0 : index
    %c15 = arith.constant 15 : index
    %c0_70 = arith.constant 0 : index
    %c0_71 = arith.constant 0 : index
    %153 = vector.load %arg2[%c0_69, %c15, %c0_70, %c0_71] : memref<1x25x32x128xbf16, #tpu.memory_space<vmem>>, vector<1x1x32x128xbf16>
    %154 = vector.shape_cast %153 : vector<1x1x32x128xbf16> to vector<32x128xbf16>
    %155 = arith.extf %154 : vector<32x128xbf16> to vector<32x128xf32>
    %156 = vector.extract_strided_slice %2 {offsets = [0, 15], sizes = [32, 1], strides = [1, 1]} : vector<32x25xf32> to vector<32x1xf32>
    %157 = vector.broadcast %156 : vector<32x1xf32> to vector<32x128xf32>
    %158 = arith.mulf %155, %157 : vector<32x128xf32>
    %159 = arith.addf %152, %158 : vector<32x128xf32>
    %c0_72 = arith.constant 0 : index
    %c19 = arith.constant 19 : index
    %c0_73 = arith.constant 0 : index
    %c0_74 = arith.constant 0 : index
    %160 = vector.load %arg2[%c0_72, %c19, %c0_73, %c0_74] : memref<1x25x32x128xbf16, #tpu.memory_space<vmem>>, vector<1x1x32x128xbf16>
    %161 = vector.shape_cast %160 : vector<1x1x32x128xbf16> to vector<32x128xbf16>
    %162 = arith.extf %161 : vector<32x128xbf16> to vector<32x128xf32>
    %163 = vector.extract_strided_slice %2 {offsets = [0, 19], sizes = [32, 1], strides = [1, 1]} : vector<32x25xf32> to vector<32x1xf32>
    %164 = vector.broadcast %163 : vector<32x1xf32> to vector<32x128xf32>
    %165 = arith.mulf %162, %164 : vector<32x128xf32>
    %166 = arith.addf %159, %165 : vector<32x128xf32>
    %c0_75 = arith.constant 0 : index
    %c23 = arith.constant 23 : index
    %c0_76 = arith.constant 0 : index
    %c0_77 = arith.constant 0 : index
    %167 = vector.load %arg2[%c0_75, %c23, %c0_76, %c0_77] : memref<1x25x32x128xbf16, #tpu.memory_space<vmem>>, vector<1x1x32x128xbf16>
    %168 = vector.shape_cast %167 : vector<1x1x32x128xbf16> to vector<32x128xbf16>
    %169 = arith.extf %168 : vector<32x128xbf16> to vector<32x128xf32>
    %170 = vector.extract_strided_slice %2 {offsets = [0, 23], sizes = [32, 1], strides = [1, 1]} : vector<32x25xf32> to vector<32x1xf32>
    %171 = vector.broadcast %170 : vector<32x1xf32> to vector<32x128xf32>
    %172 = arith.mulf %169, %171 : vector<32x128xf32>
    %173 = arith.addf %166, %172 : vector<32x128xf32>
    %174 = arith.addf %50, %91 : vector<32x128xf32>
    %175 = arith.addf %174, %132 : vector<32x128xf32>
    %176 = arith.addf %175, %173 : vector<32x128xf32>
    %c0_78 = arith.constant 0 : index
    %c0_79 = arith.constant 0 : index
    %177 = vector.load %arg3[%c0_78, %c0_79] : memref<8x32xf32, #tpu.memory_space<vmem>>, vector<8x32xf32>
    %cst = arith.constant dense<0.000000e+00> : vector<8x128xf32>
    %178 = tpu.matmul %177, %176, %cst {dimension_numbers = #tpu.dot_dimension_numbers<[1], [0], [0], [1], [0, 0, 1, 1], [], []>} : vector<8x32xf32>, vector<32x128xf32>, vector<8x128xf32> -> vector<8x128xf32>
    %c0_80 = arith.constant 0 : index
    %c0_81 = arith.constant 0 : index
    %179 = vector.load %arg4[%c0_80, %c0_81] : memref<8x1xf32, #tpu.memory_space<vmem>>, vector<8x1xf32>
    %180 = vector.broadcast %179 : vector<8x1xf32> to vector<8x128xf32>
    %181 = arith.addf %178, %180 : vector<8x128xf32>
    %c0_82 = arith.constant 0 : index
    %c0_83 = arith.constant 0 : index
    %c0_84 = arith.constant 0 : index
    %182 = vector.load %arg5[%c0_82, %c0_83, %c0_84] : memref<1x8x128xf32, #tpu.memory_space<vmem>>, vector<1x8x128xf32>
    %183 = vector.shape_cast %182 : vector<1x8x128xf32> to vector<8x128xf32>
    %184 = vector.shape_cast %181 : vector<8x128xf32> to vector<1x8x128xf32>
    tpu.vector_store %arg5[%c0_82, %c0_83, %c0_84], %184 {strides = array<i32>} : memref<1x8x128xf32, #tpu.memory_space<vmem>>, vector<1x8x128xf32>,
    return
  }
  func.func @transform_0(%arg0: i32) -> (i32, i32, i32) {
    %c0_i32 = arith.constant 0 : i32
    %c0_i32_0 = arith.constant 0 : i32
    %c0_i32_1 = arith.constant 0 : i32
    return %arg0, %c0_i32, %c0_i32_0 : i32, i32, i32
  }
  func.func @transform_1(%arg0: i32) -> (i32, i32, i32, i32) {
    %c0_i32 = arith.constant 0 : i32
    %c0_i32_0 = arith.constant 0 : i32
    %c0_i32_1 = arith.constant 0 : i32
    %c0_i32_2 = arith.constant 0 : i32
    return %arg0, %c0_i32, %c0_i32_0, %c0_i32_1 : i32, i32, i32, i32
  }
  func.func @transform_2(%arg0: i32) -> (i32, i32) {
    %c0_i32 = arith.constant 0 : i32
    %c0_i32_0 = arith.constant 0 : i32
    %c0_i32_1 = arith.constant 0 : i32
    return %c0_i32, %c0_i32_0 : i32, i32
  }
  func.func @transform_3(%arg0: i32) -> (i32, i32) {
    %c0_i32 = arith.constant 0 : i32
    %c0_i32_0 = arith.constant 0 : i32
    %c0_i32_1 = arith.constant 0 : i32
    return %c0_i32, %c0_i32_0 : i32, i32
  }
  func.func @transform_4(%arg0: i32) -> (i32, i32, i32) {
    %c0_i32 = arith.constant 0 : i32
    %c0_i32_0 = arith.constant 0 : i32
    %c0_i32_1 = arith.constant 0 : i32
    return %arg0, %c0_i32, %c0_i32_0 : i32, i32, i32
  }
}

</mosaic_0001>

<llo_original>
// kernel: model_builder_forward.3
$region0: #{model_builder_forward.3}
  #allocation0 [shape = 'u32[]', space=smem, size = 0x4, offset = 0x4, fixed_abs, tag = 'smem constant byte address 0x4 - core index']
  #allocation1 [shape = 'u32[144,128]{1,0:T(1,128)}', space=vmem, size = 0x12000, scoped, tag = 'internal scratch']
  %s0 = inlined_call_operand.vmem [shape: bf16[768,27], index: 0, kind: input, shape index: {}]
  %s1 = inlined_call_operand.vmem [shape: bf16[27,128], index: 1, kind: input, shape index: {}]
  %s2 = inlined_call_operand.vmem [shape: f32[1,128], index: 2, kind: input, shape index: {}]
  %s3 = inlined_call_operand.vmem [shape: bf16[768,128], index: 3, kind: output, shape index: {}]
  %s4 = sld [smem:[#allocation0]]
  $region45: #{model_builder_forward.3} parent=0
    _
  %s6 = ssub.s32 1, %s4
  %s7 = scalar_select 0, %s6, %s4
  loop: start=0, step=1, limit=5
  $region2: #{model_builder_forward.3} parent=0 // loop_pre_header
    _
  $region3: #{model_builder_forward.3} parent=0 // loop_header
    %s9 = sphi 0, %s13
    %p10 = scmp.ge.s32.totalorder %s9, 5
    %s16 = sphi 0, %s28
    %s17 = sphi 0, %s24
    %s18 = sphi 0, %s16
    %s19 = sphi 0, %s17
    %s20 = sphi 0, %s18
    %s21 = sphi 0, %s19
    %s31 = sphi 0, %s33
    %s34 = sphi 0, %s31
    %s35 = sphi 0, %s34
    %s51 = sphi 0, %s35
    %s57 = sphi 0, %s59
    %s60 = sphi 0, %s57
    %s61 = sphi 0, %s60
    %s77 = sphi 0, %s61
    %s83 = sphi 0, %s85
    %s86 = sphi 0, %s83
    %s87 = sphi 0, %s86
    %s103 = sphi 0, %s87
    %s111 = sphi 0, %s113
    %s114 = sphi 0, %s111
    %s115 = sphi 0, %s114
    %s131 = sphi 0, %s115
  $region4: #{model_builder_forward.3} parent=0 // loop_header_branch
    %12 = sbr.rel (%p10) target = $region8
  $region5: #{model_builder_forward.3} parent=0 // loop_body
    %s14 = ssub.s32 %s9, 1
    %s15 = ssub.s32 %s9, 2
    %s22 = sadd.s32 1, %s17
    %p23 = scmp.ge.s32.totalorder %s22, 1
    %s24 = scalar_select %p23, 0, %s22
    %s25 = sadd.s32 1, %s16
    %s26 = scalar_select %p23, %s25, %s16
    %p27 = scmp.ge.s32.totalorder %s26, 3
    %s28 = scalar_select %p27, 0, %s26
    %s29 = ssub.s32 %s16, %s28
    %p30 = scmp.eq.s32.totalorder %s29, 0
    %s32 = sadd.s32 %s31, 1
    %s33 = scalar_select %p30, %s31, %s32
    %p36 = pneg %p30
    %p37 = scmp.eq.s32.totalorder %s9, 2
    %p38 = por %p36, %p37
    %p39 = scmp.ne.s32.totalorder %s31, %s34
    %p40 = scmp.eq.s32.totalorder %s9, 0
    %p41 = por %p39, %p40
    %p42 = scmp.ne.s32.totalorder %s31, %s34
    %p43 = scmp.eq.s32.totalorder %s14, 2
    %p44 = por %p42, %p43
    %p45 = scmp.ne.s32.totalorder %s34, %s35
    %p46 = scmp.eq.s32.totalorder %s14, 0
    %p47 = por %p45, %p46
    %p48 = scmp.ne.s32.totalorder %s34, %s35
    %p49 = scmp.eq.s32.totalorder %s15, 2
    %p50 = por %p48, %p49
    %p52 = scmp.ne.s32.totalorder %s35, %s51
    %p53 = scmp.eq.s32.totalorder %s15, 0
    %p54 = por %p52, %p53
    %s55 = ssub.s32 %s17, %s24
    %p56 = scmp.eq.s32.totalorder %s55, 0
    %s58 = sadd.s32 %s57, 1
    %s59 = scalar_select %p56, %s57, %s58
    %p62 = pneg %p56
    %p63 = scmp.eq.s32.totalorder %s9, 2
    %p64 = por %p62, %p63
    %p65 = scmp.ne.s32.totalorder %s57, %s60
    %p66 = scmp.eq.s32.totalorder %s9, 0
    %p67 = por %p65, %p66
    %p68 = scmp.ne.s32.totalorder %s57, %s60
    %p69 = scmp.eq.s32.totalorder %s14, 2
    %p70 = por %p68, %p69
    %p71 = scmp.ne.s32.totalorder %s60, %s61
    %p72 = scmp.eq.s32.totalorder %s14, 0
    %p73 = por %p71, %p72
    %p74 = scmp.ne.s32.totalorder %s60, %s61
    %p75 = scmp.eq.s32.totalorder %s15, 2
    %p76 = por %p74, %p75
    %p78 = scmp.ne.s32.totalorder %s61, %s77
    %p79 = scmp.eq.s32.totalorder %s15, 0
    %p80 = por %p78, %p79
    %s81 = ssub.s32 %s17, %s24
    %p82 = scmp.eq.s32.totalorder %s81, 0
    %s84 = sadd.s32 %s83, 1
    %s85 = scalar_select %p82, %s83, %s84
    %p88 = pneg %p82
    %p89 = scmp.eq.s32.totalorder %s9, 2
    %p90 = por %p88, %p89
    %p91 = scmp.ne.s32.totalorder %s83, %s86
    %p92 = scmp.eq.s32.totalorder %s9, 0
    %p93 = por %p91, %p92
    %p94 = scmp.ne.s32.totalorder %s83, %s86
    %p95 = scmp.eq.s32.totalorder %s14, 2
    %p96 = por %p94, %p95
    %p97 = scmp.ne.s32.totalorder %s86, %s87
    %p98 = scmp.eq.s32.totalorder %s14, 0
    %p99 = por %p97, %p98
    %p100 = scmp.ne.s32.totalorder %s86, %s87
    %p101 = scmp.eq.s32.totalorder %s15, 2
    %p102 = por %p100, %p101
    %p104 = scmp.ne.s32.totalorder %s87, %s103
    %p105 = scmp.eq.s32.totalorder %s15, 0
    %p106 = por %p104, %p105
    %s107 = ssub.s32 %s16, %s28
    %s108 = ssub.s32 %s17, %s24
    %s109 = sor.u32 %s107, %s108
    %p110 = scmp.eq.s32.totalorder %s109, 0
    %s112 = sadd.s32 %s111, 1
    %s113 = scalar_select %p110, %s111, %s112
    %p116 = pneg %p110
    %p117 = scmp.eq.s32.totalorder %s9, 2
    %p118 = por %p116, %p117
    %p119 = scmp.ne.s32.totalorder %s111, %s114
    %p120 = scmp.eq.s32.totalorder %s9, 0
    %p121 = por %p119, %p120
    %p122 = scmp.ne.s32.totalorder %s111, %s114
    %p123 = scmp.eq.s32.totalorder %s14, 2
    %p124 = por %p122, %p123
    %p125 = scmp.ne.s32.totalorder %s114, %s115
    %p126 = scmp.eq.s32.totalorder %s14, 0
    %p127 = por %p125, %p126
    %p128 = scmp.ne.s32.totalorder %s114, %s115
    %p129 = scmp.eq.s32.totalorder %s15, 2
    %p130 = por %p128, %p129
    %p132 = scmp.ne.s32.totalorder %s115, %s131
    %p133 = scmp.eq.s32.totalorder %s15, 0
    %p134 = por %p132, %p133
    %p135 = scmp.le.s32.totalorder 1, %s9
    %p136 = scmp.lt.s32.totalorder %s9, 4
    %p137 = pnand %p135, %p136
    %p138 = pneg %p137
    // Predicated region
    $region9: #{model_builder_forward.3} parent=5 // pred_check
      _
    $region10: #{model_builder_forward.3} parent=5 // pred_check_branch
      %140 = sbr.rel (%p137) target = $region12
    $region11: #{model_builder_forward.3} parent=5 // pred_region
      %s141 = ssub.s32 %s9, 1
      // Predicated region
      $region13: #{model_builder_forward.3} parent=11 // pred_check
        %p142 = pneg %p73
      $region14: #{model_builder_forward.3} parent=11 // pred_check_branch
        %144 = sbr.rel (%p142) target = $region16
      $region15: #{model_builder_forward.3} parent=11 // pred_region
        %p145 = scmp.lt.s32.totalorder %s19, 0
        %s146 = scalar_select %p145, %s19, 0
        %s147 = smul.addr %s146, 4
        %s148 = scalar_lea.vmem %s1, %s147
      $region16: #{model_builder_forward.3} parent=11 // pred_fallthru
        _
      // Predicated region
      $region17: #{model_builder_forward.3} parent=11 // pred_check
        %p149 = pneg %p99
      $region18: #{model_builder_forward.3} parent=11 // pred_check_branch
        %151 = sbr.rel (%p149) target = $region20
      $region19: #{model_builder_forward.3} parent=11 // pred_region
        %p152 = scmp.lt.s32.totalorder %s19, 0
        %s153 = scalar_select %p152, %s19, 0
        %s154 = scalar_lea.vmem %s2, %s153
      $region20: #{model_builder_forward.3} parent=11 // pred_fallthru
        _
    $region12: #{model_builder_forward.3} parent=5 // pred_fallthru
      _
    %p155 = scmp.lt.s32.totalorder %s9, 3
    // Predicated region
    $region21: #{model_builder_forward.3} parent=5 // pred_check
      %p156 = pneg %p155
    $region22: #{model_builder_forward.3} parent=5 // pred_check_branch
      %158 = sbr.rel (%p156) target = $region24
    $region23: #{model_builder_forward.3} parent=5 // pred_region
      // Predicated region
      $region25: #{model_builder_forward.3} parent=23 // pred_check
        %p159 = pneg %p41
      $region26: #{model_builder_forward.3} parent=23 // pred_check_branch
        %161 = sbr.rel (%p159) target = $region28
      $region27: #{model_builder_forward.3} parent=23 // pred_region
        %s162 = smul.u32 32, %s16
        %p163 = scmp.lt.s32.totalorder %s162, 95
        %s164 = scalar_select %p163, %s162, 95
        %s165 = smul.addr %s164, 4
        %s166 = scalar_lea.vmem %s0, %s165
        %s167 = smul.u32 32, %s16
      $region28: #{model_builder_forward.3} parent=23 // pred_fallthru
        _
    $region24: #{model_builder_forward.3} parent=5 // pred_fallthru
      _
    %p168 = scmp.le.s32.totalorder 1, %s9
    %p169 = scmp.lt.s32.totalorder %s9, 4
    %p170 = pnand %p168, %p169
    %p171 = pneg %p170
    // Predicated region
    $region29: #{model_builder_forward.3} parent=5 // pred_check
      _
    $region30: #{model_builder_forward.3} parent=5 // pred_check_branch
      %173 = sbr.rel (%p170) target = $region32
    $region31: #{model_builder_forward.3} parent=5 // pred_region
      %s174 = ssub.s32 %s9, 1
      %s175 = smul.u32 32, %s18
      %p176 = scmp.lt.s32.totalorder %s175, 95
      %s177 = scalar_select %p176, %s175, 95
      %s178 = smul.addr %s177, 4
      %s179 = scalar_lea.vmem %s0, %s178
      %p180 = pneg %p47
      %p181 = pneg %p44
      %p182 = scmp.lt.s32.totalorder %s19, 0
      %s183 = scalar_select %p182, %s19, 0
      %s184 = smul.addr %s183, 4
      %s185 = scalar_lea.vmem %s1, %s184
      %p186 = pneg %p73
      %p187 = pneg %p70
      %p188 = scmp.lt.s32.totalorder %s19, 0
      %s189 = scalar_select %p188, %s19, 0
      %s190 = scalar_lea.vmem %s2, %s189
      %p191 = pneg %p99
      %p192 = pneg %p96
      %p193 = pneg %p127
      %p194 = pneg %p124
      %s195 = smul.u32 32, %s18
      %p196 = scmp.lt.s32.totalorder %s195, 95
      %s197 = scalar_select %p196, %s195, 95
      %p198 = scmp.lt.s32.totalorder %s19, 0
      %s199 = scalar_select %p198, %s19, 0
      %s200 = sadd.s32 %s199, %s197
      %s201 = smul.addr %s200, 4
      %s202 = scalar_lea.vmem %s3, %s201
      %s203 = smul.u32 32, %s18
      %p204 = scmp.lt.s32.totalorder %s203, 95
      %s205 = scalar_select %p204, %s203, 95
      %s206 = smul.addr %s205, 4
      %s207 = scalar_lea.vmem %s0, %s206
      %s208 = smul.u32 32, %s18
      %p209 = scmp.lt.s32.totalorder %s19, 0
      %s210 = scalar_select %p209, %s19, 0
      %s211 = smul.addr %s210, 4
      %s212 = scalar_lea.vmem %s1, %s211
      %p213 = scmp.lt.s32.totalorder %s19, 0
      %s214 = scalar_select %p213, %s19, 0
      %s215 = scalar_lea.vmem %s2, %s214
      %s216 = smul.u32 32, %s18
      %p217 = scmp.lt.s32.totalorder %s216, 95
      %s218 = scalar_select %p217, %s216, 95
      %p219 = scmp.lt.s32.totalorder %s19, 0
      %s220 = scalar_select %p219, %s19, 0
      %s221 = sadd.s32 %s220, %s218
      %s222 = smul.addr %s221, 4
      %s223 = scalar_lea.vmem %s3, %s222
      %s224 = smul.u32 32, %s18
      %v226 = vld [vmem:[%s207] sm:$0xf]
      %v227 = vld [vmem:[%s207 + $0x4] sm:$0xf]
      %v228 = vld [vmem:[%s207 + $0x8] sm:$0xf]
      %v229 = vld [vmem:[%s207 + $0xc] sm:$0xf]
      %v230 = vld [vmem:[%s207 + $0x10] sm:$0xf]
      %v231 = vld [vmem:[%s207 + $0x14] sm:$0xf]
      %v232 = vld [vmem:[%s207 + $0x18] sm:$0xf]
      %v233 = vld [vmem:[%s207 + $0x1c] sm:$0xf]
      %v234 = vld [vmem:[%s207 + $0x20] sm:$0xf]
      %v235 = vld [vmem:[%s207 + $0x24] sm:$0xf]
      %v236 = vld [vmem:[%s207 + $0x28] sm:$0xf]
      %v237 = vld [vmem:[%s207 + $0x2c] sm:$0xf]
      %v238 = vld [vmem:[%s207 + $0x30] sm:$0xf]
      %v239 = vld [vmem:[%s207 + $0x34] sm:$0xf]
      %v240 = vld [vmem:[%s207 + $0x38] sm:$0xf]
      %v241 = vld [vmem:[%s207 + $0x3c] sm:$0xf]
      %v242 = vld [vmem:[%s207 + $0x40] sm:$0xf]
      %v243 = vld [vmem:[%s207 + $0x44] sm:$0xf]
      %v244 = vld [vmem:[%s207 + $0x48] sm:$0xf]
      %v245 = vld [vmem:[%s207 + $0x4c] sm:$0xf]
      %v246 = vld [vmem:[%s207 + $0x50] sm:$0xf]
      %v247 = vld [vmem:[%s207 + $0x54] sm:$0xf]
      %v248 = vld [vmem:[%s207 + $0x58] sm:$0xf]
      %v249 = vld [vmem:[%s207 + $0x5c] sm:$0xf]
      %v250 = vld [vmem:[%s207 + $0x60] sm:$0xf]
      %v251 = vld [vmem:[%s207 + $0x64] sm:$0xf]
      %v252 = vld [vmem:[%s207 + $0x68] sm:$0xf]
      %v253 = vld [vmem:[%s207 + $0x6c] sm:$0xf]
      %v254 = vld [vmem:[%s207 + $0x70] sm:$0xf]
      %v255 = vld [vmem:[%s207 + $0x74] sm:$0xf]
      %v256 = vld [vmem:[%s207 + $0x78] sm:$0xf]
      %v257 = vld [vmem:[%s207 + $0x7c] sm:$0xf]
      %v258 = vld [vmem:[%s212] sm:$0xf]
      %v259 = vld [vmem:[%s212 + $0x4] sm:$0xf]
      %v260 = vld [vmem:[%s212 + $0x8] sm:$0xf]
      %v261 = vld [vmem:[%s212 + $0xc] sm:$0x3]
      %v262 = vld [vmem:[%s215] sm:$0x1]
      %v264 = vlaneseq
      %v265 = vshrl.u32 %v264, 7
      %v266 = vsub.s32 0, %v265
      %v267 = vrot.slane %v262, %v266
      %v301 = vunpack.c.l.b16 %v226
      %v302 = vunpack.c.l.b16 %v227
      %v303 = vunpack.c.l.b16 %v228
      %v304 = vunpack.c.l.b16 %v229
      %v305 = vunpack.c.l.b16 %v230
      %v306 = vunpack.c.l.b16 %v231
      %v307 = vunpack.c.l.b16 %v232
      %v308 = vunpack.c.l.b16 %v233
      %v309 = vunpack.c.l.b16 %v234
      %v310 = vunpack.c.l.b16 %v235
      %v311 = vunpack.c.l.b16 %v236
      %v312 = vunpack.c.l.b16 %v237
      %v313 = vunpack.c.l.b16 %v238
      %v314 = vunpack.c.l.b16 %v239
      %v315 = vunpack.c.l.b16 %v240
      %v316 = vunpack.c.l.b16 %v241
      %v317 = vunpack.c.l.b16 %v242
      %v318 = vunpack.c.l.b16 %v243
      %v319 = vunpack.c.l.b16 %v244
      %v320 = vunpack.c.l.b16 %v245
      %v321 = vunpack.c.l.b16 %v246
      %v322 = vunpack.c.l.b16 %v247
      %v323 = vunpack.c.l.b16 %v248
      %v324 = vunpack.c.l.b16 %v249
      %v325 = vunpack.c.l.b16 %v250
      %v326 = vunpack.c.l.b16 %v251
      %v327 = vunpack.c.l.b16 %v252
      %v328 = vunpack.c.l.b16 %v253
      %v329 = vunpack.c.l.b16 %v254
      %v330 = vunpack.c.l.b16 %v255
      %v331 = vunpack.c.l.b16 %v256
      %v332 = vunpack.c.l.b16 %v257
      %v333 = vpack.c.b16 %v302, %v301
      %v334 = vpack.c.b16 %v304, %v303
      %v335 = vpack.c.b16 %v306, %v305
      %v336 = vpack.c.b16 %v308, %v307
      %v337 = vpack.c.b16 %v310, %v309
      %v338 = vpack.c.b16 %v312, %v311
      %v339 = vpack.c.b16 %v314, %v313
      %v340 = vpack.c.b16 %v316, %v315
      %v341 = vpack.c.b16 %v318, %v317
      %v342 = vpack.c.b16 %v320, %v319
      %v343 = vpack.c.b16 %v322, %v321
      %v344 = vpack.c.b16 %v324, %v323
      %v345 = vpack.c.b16 %v326, %v325
      %v346 = vpack.c.b16 %v328, %v327
      %v347 = vpack.c.b16 %v330, %v329
      %v348 = vpack.c.b16 %v332, %v331
      %v353 = vunpack.c.l.b16 %v258
      %v354 = vunpack.c.l.b16 %v259
      %v355 = vunpack.c.l.b16 %v260
      %v356 = vunpack.c.l.b16 %v261
      %v357 = vpack.c.b16 %v354, %v353
      %v358 = vpack.c.b16 %v356, %v355
      %vm360 = vcmask 220160
      %v362 = vsel %vm360, %v333, 0
      %v365 = vsel %vm360, %v334, 0
      %v368 = vsel %vm360, %v335, 0
      %v371 = vsel %vm360, %v336, 0
      %v374 = vsel %vm360, %v337, 0
      %v377 = vsel %vm360, %v338, 0
      %v380 = vsel %vm360, %v339, 0
      %v383 = vsel %vm360, %v340, 0
      %v386 = vsel %vm360, %v341, 0
      %v389 = vsel %vm360, %v342, 0
      %v392 = vsel %vm360, %v343, 0
      %v395 = vsel %vm360, %v344, 0
      %v398 = vsel %vm360, %v345, 0
      %v401 = vsel %vm360, %v346, 0
      %v404 = vsel %vm360, %v347, 0
      %v407 = vsel %vm360, %v348, 0
      %vm409 = vcmask 1044480
      %vm410 = vcmask 1045504
      %v411 = vsel %vm409, 4294967295, 65535
      %v412 = vsel %vm410, %v411, 0
      %v414 = vand.u32 %v358, %v412
      %416 = vmatprep.subr.bf16.mxu0 0
      %417 = vmatpush1.bf16.msra.mxu0 %v357
      %418 = vmatprep.subr.bf16.mxu0 0
      %419 = vmatpush1.bf16.msra.mxu0 %v414
      %420 = vmatprep.subr.bf16.mxu0 0
      %421 = vmatpush1.bf16.msra.mxu0 0
      %422 = vmatprep.subr.bf16.mxu0 0
      %423 = vmatpush1.bf16.msra.mxu0 0
      %424 = vmatprep.subr.bf16.mxu0 0
      %425 = vmatpush1.bf16.msra.mxu0 0
      %426 = vmatprep.subr.bf16.mxu0 0
      %427 = vmatpush1.bf16.msra.mxu0 0
      %428 = vmatprep.subr.bf16.mxu0 0
      %429 = vmatpush1.bf16.msra.mxu0 0
      %430 = vmatprep.subr.bf16.mxu0 0
      %431 = vmatpush1.bf16.msra.mxu0 0
      %432 = vmatprep.subr.bf16.mxu0 0
      %433 = vmatpush1.bf16.msra.mxu0 0
      %434 = vmatprep.subr.bf16.mxu0 0
      %435 = vmatpush1.bf16.msra.mxu0 0
      %436 = vmatprep.subr.bf16.mxu0 0
      %437 = vmatpush1.bf16.msra.mxu0 0
      %438 = vmatprep.subr.bf16.mxu0 0
      %439 = vmatpush1.bf16.msra.mxu0 0
      %440 = vmatprep.subr.bf16.mxu0 0
      %441 = vmatpush1.bf16.msra.mxu0 0
      %442 = vmatprep.subr.bf16.mxu0 0
      %443 = vmatpush1.bf16.msra.mxu0 0
      %444 = vmatprep.subr.bf16.mxu0 0
      %445 = vmatpush1.bf16.msra.mxu0 0
      %446 = vmatprep.subr.bf16.mxu0 0
      %447 = vmatpush1.bf16.msra.mxu0 0
      %448 = vmatprep.mubr.bf16.mxu0 0
      %449 = vmatmul.mubr.bf16.gmra.mrb[0].mxu0 %v362
      %v450 = vpop.f32.mrb[0].mxu0
      %v451 = vadd.f32 %v267, %v450
      %v452 = vpop.f32.mrb[0].mxu0
      %v453 = vpop.f32.mrb[0].mxu0
      %v454 = vadd.f32 %v267, %v453
      %v455 = vpop.f32.mrb[0].mxu0
      %456 = vmatprep.mubr.bf16.mxu0 0
      %457 = vmatmul.mubr.bf16.gmra.mrb[0].mxu0 %v365
      %v458 = vpop.f32.mrb[0].mxu0
      %v459 = vadd.f32 %v267, %v458
      %v460 = vpop.f32.mrb[0].mxu0
      %v461 = vpop.f32.mrb[0].mxu0
      %v462 = vadd.f32 %v267, %v461
      %v463 = vpop.f32.mrb[0].mxu0
      %464 = vmatprep.mubr.bf16.mxu0 0
      %465 = vmatmul.mubr.bf16.gmra.mrb[0].mxu0 %v368
      %v466 = vpop.f32.mrb[0].mxu0
      %v467 = vadd.f32 %v267, %v466
      %v468 = vpop.f32.mrb[0].mxu0
      %v469 = vpop.f32.mrb[0].mxu0
      %v470 = vadd.f32 %v267, %v469
      %v471 = vpop.f32.mrb[0].mxu0
      %472 = vmatprep.mubr.bf16.mxu0 0
      %473 = vmatmul.mubr.bf16.gmra.mrb[0].mxu0 %v371
      %v474 = vpop.f32.mrb[0].mxu0
      %v475 = vadd.f32 %v267, %v474
      %v476 = vpop.f32.mrb[0].mxu0
      %v477 = vpop.f32.mrb[0].mxu0
      %v478 = vadd.f32 %v267, %v477
      %v479 = vpop.f32.mrb[0].mxu0
      %480 = vmatprep.mubr.bf16.mxu0 0
      %481 = vmatmul.mubr.bf16.gmra.mrb[0].mxu0 %v374
      %v482 = vpop.f32.mrb[0].mxu0
      %v483 = vadd.f32 %v267, %v482
      %v484 = vpop.f32.mrb[0].mxu0
      %v485 = vpop.f32.mrb[0].mxu0
      %v486 = vadd.f32 %v267, %v485
      %v487 = vpop.f32.mrb[0].mxu0
      %488 = vmatprep.mubr.bf16.mxu0 0
      %489 = vmatmul.mubr.bf16.gmra.mrb[0].mxu0 %v377
      %v490 = vpop.f32.mrb[0].mxu0
      %v491 = vadd.f32 %v267, %v490
      %v492 = vpop.f32.mrb[0].mxu0
      %v493 = vpop.f32.mrb[0].mxu0
      %v494 = vadd.f32 %v267, %v493
      %v495 = vpop.f32.mrb[0].mxu0
      %496 = vmatprep.mubr.bf16.mxu0 0
      %497 = vmatmul.mubr.bf16.gmra.mrb[0].mxu0 %v380
      %v498 = vpop.f32.mrb[0].mxu0
      %v499 = vadd.f32 %v267, %v498
      %v500 = vpop.f32.mrb[0].mxu0
      %v501 = vpop.f32.mrb[0].mxu0
      %v502 = vadd.f32 %v267, %v501
      %v503 = vpop.f32.mrb[0].mxu0
      %504 = vmatprep.mubr.bf16.mxu0 0
      %505 = vmatmul.mubr.bf16.gmra.mrb[0].mxu0 %v383
      %v506 = vpop.f32.mrb[0].mxu0
      %v507 = vadd.f32 %v267, %v506
      %v508 = vpop.f32.mrb[0].mxu0
      %v509 = vpop.f32.mrb[0].mxu0
      %v510 = vadd.f32 %v267, %v509
      %v511 = vpop.f32.mrb[0].mxu0
      %512 = vmatprep.mubr.bf16.mxu0 0
      %513 = vmatmul.mubr.bf16.gmra.mrb[0].mxu0 %v386
      %v514 = vpop.f32.mrb[0].mxu0
      %v515 = vadd.f32 %v267, %v514
      %v516 = vpop.f32.mrb[0].mxu0
      %v517 = vpop.f32.mrb[0].mxu0
      %v518 = vadd.f32 %v267, %v517
      %v519 = vpop.f32.mrb[0].mxu0
      %520 = vmatprep.mubr.bf16.mxu0 0
      %521 = vmatmul.mubr.bf16.gmra.mrb[0].mxu0 %v389
      %v522 = vpop.f32.mrb[0].mxu0
      %v523 = vadd.f32 %v267, %v522
      %v524 = vpop.f32.mrb[0].mxu0
      %v525 = vpop.f32.mrb[0].mxu0
      %v526 = vadd.f32 %v267, %v525
      %v527 = vpop.f32.mrb[0].mxu0
      %528 = vmatprep.mubr.bf16.mxu0 0
      %529 = vmatmul.mubr.bf16.gmra.mrb[0].mxu0 %v392
      %v530 = vpop.f32.mrb[0].mxu0
      %v531 = vadd.f32 %v267, %v530
      %v532 = vpop.f32.mrb[0].mxu0
      %v533 = vpop.f32.mrb[0].mxu0
      %v534 = vadd.f32 %v267, %v533
      %v535 = vpop.f32.mrb[0].mxu0
      %536 = vmatprep.mubr.bf16.mxu0 0
      %537 = vmatmul.mubr.bf16.gmra.mrb[0].mxu0 %v395
      %v538 = vpop.f32.mrb[0].mxu0
      %v539 = vadd.f32 %v267, %v538
      %v540 = vpop.f32.mrb[0].mxu0
      %v541 = vpop.f32.mrb[0].mxu0
      %v542 = vadd.f32 %v267, %v541
      %v543 = vpop.f32.mrb[0].mxu0
      %544 = vmatprep.mubr.bf16.mxu0 0
      %545 = vmatmul.mubr.bf16.gmra.mrb[0].mxu0 %v398
      %v546 = vpop.f32.mrb[0].mxu0
      %v547 = vadd.f32 %v267, %v546
      %v548 = vpop.f32.mrb[0].mxu0
      %v549 = vpop.f32.mrb[0].mxu0
      %v550 = vadd.f32 %v267, %v549
      %v551 = vpop.f32.mrb[0].mxu0
      %552 = vmatprep.mubr.bf16.mxu0 0
      %553 = vmatmul.mubr.bf16.gmra.mrb[0].mxu0 %v401
      %v554 = vpop.f32.mrb[0].mxu0
      %v555 = vadd.f32 %v267, %v554
      %v556 = vpop.f32.mrb[0].mxu0
      %v557 = vpop.f32.mrb[0].mxu0
      %v558 = vadd.f32 %v267, %v557
      %v559 = vpop.f32.mrb[0].mxu0
      %560 = vmatprep.mubr.bf16.mxu0 0
      %561 = vmatmul.mubr.bf16.gmra.mrb[0].mxu0 %v404
      %v562 = vpop.f32.mrb[0].mxu0
      %v563 = vadd.f32 %v267, %v562
      %v564 = vpop.f32.mrb[0].mxu0
      %v565 = vpop.f32.mrb[0].mxu0
      %v566 = vadd.f32 %v267, %v565
      %v567 = vpop.f32.mrb[0].mxu0
      %568 = vmatprep.mubr.bf16.mxu0 0
      %569 = vmatmul.mubr.bf16.gmra.mrb[0].mxu0 %v407
      %v570 = vpop.f32.mrb[0].mxu0
      %v571 = vadd.f32 %v267, %v570
      %v572 = vpop.f32.mrb[0].mxu0
      %v573 = vpop.f32.mrb[0].mxu0
      %v574 = vadd.f32 %v267, %v573
      %v575 = vpop.f32.mrb[0].mxu0
      %576 = vdwg.mxu0
      %v577 = vmax.f32 %v451, 0.0
      %v578 = vmax.f32 %v454, 0.0
      %v579 = vmax.f32 %v459, 0.0
      %v580 = vmax.f32 %v462, 0.0
      %v581 = vmax.f32 %v467, 0.0
      %v582 = vmax.f32 %v470, 0.0
      %v583 = vmax.f32 %v475, 0.0
      %v584 = vmax.f32 %v478, 0.0
      %v585 = vmax.f32 %v483, 0.0
      %v586 = vmax.f32 %v486, 0.0
      %v587 = vmax.f32 %v491, 0.0
      %v588 = vmax.f32 %v494, 0.0
      %v589 = vmax.f32 %v499, 0.0
      %v590 = vmax.f32 %v502, 0.0
      %v591 = vmax.f32 %v507, 0.0
      %v592 = vmax.f32 %v510, 0.0
      %v593 = vmax.f32 %v515, 0.0
      %v594 = vmax.f32 %v518, 0.0
      %v595 = vmax.f32 %v523, 0.0
      %v596 = vmax.f32 %v526, 0.0
      %v597 = vmax.f32 %v531, 0.0
      %v598 = vmax.f32 %v534, 0.0
      %v599 = vmax.f32 %v539, 0.0
      %v600 = vmax.f32 %v542, 0.0
      %v601 = vmax.f32 %v547, 0.0
      %v602 = vmax.f32 %v550, 0.0
      %v603 = vmax.f32 %v555, 0.0
      %v604 = vmax.f32 %v558, 0.0
      %v605 = vmax.f32 %v563, 0.0
      %v606 = vmax.f32 %v566, 0.0
      %v607 = vmax.f32 %v571, 0.0
      %v608 = vmax.f32 %v574, 0.0
      %v609 = vpack.c.bf16 %v578, %v577
      %v610 = vpack.c.bf16 %v580, %v579
      %v611 = vpack.c.bf16 %v582, %v581
      %v612 = vpack.c.bf16 %v584, %v583
      %v613 = vpack.c.bf16 %v586, %v585
      %v614 = vpack.c.bf16 %v588, %v587
      %v615 = vpack.c.bf16 %v590, %v589
      %v616 = vpack.c.bf16 %v592, %v591
      %v617 = vpack.c.bf16 %v594, %v593
      %v618 = vpack.c.bf16 %v596, %v595
      %v619 = vpack.c.bf16 %v598, %v597
      %v620 = vpack.c.bf16 %v600, %v599
      %v621 = vpack.c.bf16 %v602, %v601
      %v622 = vpack.c.bf16 %v604, %v603
      %v623 = vpack.c.bf16 %v606, %v605
      %v624 = vpack.c.bf16 %v608, %v607
      %v641 = vunpack.c.l.b16 %v609
      %v642 = vunpack.c.h.b16 %v609
      %v643 = vunpack.c.l.b16 %v610
      %v644 = vunpack.c.h.b16 %v610
      %v645 = vunpack.c.l.b16 %v611
      %v646 = vunpack.c.h.b16 %v611
      %v647 = vunpack.c.l.b16 %v612
      %v648 = vunpack.c.h.b16 %v612
      %v649 = vunpack.c.l.b16 %v613
      %v650 = vunpack.c.h.b16 %v613
      %v651 = vunpack.c.l.b16 %v614
      %v652 = vunpack.c.h.b16 %v614
      %v653 = vunpack.c.l.b16 %v615
      %v654 = vunpack.c.h.b16 %v615
      %v655 = vunpack.c.l.b16 %v616
      %v656 = vunpack.c.h.b16 %v616
      %v657 = vunpack.c.l.b16 %v617
      %v658 = vunpack.c.h.b16 %v617
      %v659 = vunpack.c.l.b16 %v618
      %v660 = vunpack.c.h.b16 %v618
      %v661 = vunpack.c.l.b16 %v619
      %v662 = vunpack.c.h.b16 %v619
      %v663 = vunpack.c.l.b16 %v620
      %v664 = vunpack.c.h.b16 %v620
      %v665 = vunpack.c.l.b16 %v621
      %v666 = vunpack.c.h.b16 %v621
      %v667 = vunpack.c.l.b16 %v622
      %v668 = vunpack.c.h.b16 %v622
      %v669 = vunpack.c.l.b16 %v623
      %v670 = vunpack.c.h.b16 %v623
      %v671 = vunpack.c.l.b16 %v624
      %v672 = vunpack.c.h.b16 %v624
      %v673 = vpack.c.b16 %v641, %v641
      %v674 = vpack.c.b16 %v642, %v642
      %v675 = vpack.c.b16 %v643, %v643
      %v676 = vpack.c.b16 %v644, %v644
      %v677 = vpack.c.b16 %v645, %v645
      %v678 = vpack.c.b16 %v646, %v646
      %v679 = vpack.c.b16 %v647, %v647
      %v680 = vpack.c.b16 %v648, %v648
      %v681 = vpack.c.b16 %v649, %v649
      %v682 = vpack.c.b16 %v650, %v650
      %v683 = vpack.c.b16 %v651, %v651
      %v684 = vpack.c.b16 %v652, %v652
      %v685 = vpack.c.b16 %v653, %v653
      %v686 = vpack.c.b16 %v654, %v654
      %v687 = vpack.c.b16 %v655, %v655
      %v688 = vpack.c.b16 %v656, %v656
      %v689 = vpack.c.b16 %v657, %v657
      %v690 = vpack.c.b16 %v658, %v658
      %v691 = vpack.c.b16 %v659, %v659
      %v692 = vpack.c.b16 %v660, %v660
      %v693 = vpack.c.b16 %v661, %v661
      %v694 = vpack.c.b16 %v662, %v662
      %v695 = vpack.c.b16 %v663, %v663
      %v696 = vpack.c.b16 %v664, %v664
      %v697 = vpack.c.b16 %v665, %v665
      %v698 = vpack.c.b16 %v666, %v666
      %v699 = vpack.c.b16 %v667, %v667
      %v700 = vpack.c.b16 %v668, %v668
      %v701 = vpack.c.b16 %v669, %v669
      %v702 = vpack.c.b16 %v670, %v670
      %v703 = vpack.c.b16 %v671, %v671
      %v704 = vpack.c.b16 %v672, %v672
      %737 = vst [vmem:[%s223] sm:$0xf] %v673
      %738 = vst [vmem:[%s223 + $0x4] sm:$0xf] %v674
      %739 = vst [vmem:[%s223 + $0x8] sm:$0xf] %v675
      %740 = vst [vmem:[%s223 + $0xc] sm:$0xf] %v676
      %741 = vst [vmem:[%s223 + $0x10] sm:$0xf] %v677
      %742 = vst [vmem:[%s223 + $0x14] sm:$0xf] %v678
      %743 = vst [vmem:[%s223 + $0x18] sm:$0xf] %v679
      %744 = vst [vmem:[%s223 + $0x1c] sm:$0xf] %v680
      %745 = vst [vmem:[%s223 + $0x20] sm:$0xf] %v681
      %746 = vst [vmem:[%s223 + $0x24] sm:$0xf] %v682
      %747 = vst [vmem:[%s223 + $0x28] sm:$0xf] %v683
      %748 = vst [vmem:[%s223 + $0x2c] sm:$0xf] %v684
      %749 = vst [vmem:[%s223 + $0x30] sm:$0xf] %v685
      %750 = vst [vmem:[%s223 + $0x34] sm:$0xf] %v686
      %751 = vst [vmem:[%s223 + $0x38] sm:$0xf] %v687
      %752 = vst [vmem:[%s223 + $0x3c] sm:$0xf] %v688
      %753 = vst [vmem:[%s223 + $0x40] sm:$0xf] %v689
      %754 = vst [vmem:[%s223 + $0x44] sm:$0xf] %v690
      %755 = vst [vmem:[%s223 + $0x48] sm:$0xf] %v691
      %756 = vst [vmem:[%s223 + $0x4c] sm:$0xf] %v692
      %757 = vst [vmem:[%s223 + $0x50] sm:$0xf] %v693
      %758 = vst [vmem:[%s223 + $0x54] sm:$0xf] %v694
      %759 = vst [vmem:[%s223 + $0x58] sm:$0xf] %v695
      %760 = vst [vmem:[%s223 + $0x5c] sm:$0xf] %v696
      %761 = vst [vmem:[%s223 + $0x60] sm:$0xf] %v697
      %762 = vst [vmem:[%s223 + $0x64] sm:$0xf] %v698
      %763 = vst [vmem:[%s223 + $0x68] sm:$0xf] %v699
      %764 = vst [vmem:[%s223 + $0x6c] sm:$0xf] %v700
      %765 = vst [vmem:[%s223 + $0x70] sm:$0xf] %v701
      %766 = vst [vmem:[%s223 + $0x74] sm:$0xf] %v702
      %767 = vst [vmem:[%s223 + $0x78] sm:$0xf] %v703
      %768 = vst [vmem:[%s223 + $0x7c] sm:$0xf] %v704
      %s769 = smul.u32 32, %s18
      %p770 = scmp.lt.s32.totalorder %s769, 95
      %s771 = scalar_select %p770, %s769, 95
      %p772 = scmp.lt.s32.totalorder %s19, 0
      %s773 = scalar_select %p772, %s19, 0
      %s774 = sadd.s32 %s773, %s771
      %s775 = smul.addr %s774, 4
      %s776 = scalar_lea.vmem %s3, %s775
      // Predicated region
      $region33: #{model_builder_forward.3} parent=31 // pred_check
        %p777 = pneg %p124
      $region34: #{model_builder_forward.3} parent=31 // pred_check_branch
        %779 = sbr.rel (%p777) target = $region36
      $region35: #{model_builder_forward.3} parent=31 // pred_region
        %s780 = smul.u32 32, %s18
      $region36: #{model_builder_forward.3} parent=31 // pred_fallthru
        _
    $region32: #{model_builder_forward.3} parent=5 // pred_fallthru
      _
    %p781 = scmp.le.s32.totalorder 2, %s9
    // Predicated region
    $region37: #{model_builder_forward.3} parent=5 // pred_check
      %p782 = pneg %p781
    $region38: #{model_builder_forward.3} parent=5 // pred_check_branch
      %784 = sbr.rel (%p782) target = $region40
    $region39: #{model_builder_forward.3} parent=5 // pred_region
      %s785 = ssub.s32 %s9, 2
      // Predicated region
      $region41: #{model_builder_forward.3} parent=39 // pred_check
        %p786 = pneg %p130
      $region42: #{model_builder_forward.3} parent=39 // pred_check_branch
        %788 = sbr.rel (%p786) target = $region44
      $region43: #{model_builder_forward.3} parent=39 // pred_region
        %s789 = smul.u32 32, %s20
        %p790 = scmp.lt.s32.totalorder %s789, 95
        %s791 = scalar_select %p790, %s789, 95
        %p792 = scmp.lt.s32.totalorder %s21, 0
        %s793 = scalar_select %p792, %s21, 0
        %s794 = sadd.s32 %s793, %s791
        %s795 = smul.addr %s794, 4
        %s796 = scalar_lea.vmem %s3, %s795
      $region44: #{model_builder_forward.3} parent=39 // pred_fallthru
        _
    $region40: #{model_builder_forward.3} parent=5 // pred_fallthru
      _
  $region6: #{model_builder_forward.3} parent=0 // loop_footer
    %s13 = sadd.s32 1, %s9
  $region7: #{model_builder_forward.3} parent=0 // loop_footer_branch
    %8 = sbr.rel target = $region3
  $region8: #{model_builder_forward.3} parent=0 // loop_exit
    _

// kernel: model_builder_forward.4
$region0: #{model_builder_forward.4}
  #allocation0 [shape = 'u32[]', space=smem, size = 0x4, offset = 0x4, fixed_abs, tag = 'smem constant byte address 0x4 - core index']
  #allocation1 [shape = 'u32[144,128]{1,0:T(1,128)}', space=vmem, size = 0x12000, scoped, tag = 'internal scratch']
  %s0 = inlined_call_operand.vmem [shape: bf16[512,144], index: 0, kind: input, shape index: {}]
  %s1 = inlined_call_operand.vmem [shape: bf16[144,128], index: 1, kind: input, shape index: {}]
  %s2 = inlined_call_operand.vmem [shape: f32[1,128], index: 2, kind: input, shape index: {}]
  %s3 = inlined_call_operand.vmem [shape: bf16[512,128], index: 3, kind: output, shape index: {}]
  %s4 = sld [smem:[#allocation0]]
  $region45: #{model_builder_forward.4} parent=0
    _
  %s6 = ssub.s32 1, %s4
  %s7 = scalar_select 0, %s6, %s4
  loop: start=0, step=1, limit=4
  $region2: #{model_builder_forward.4} parent=0 // loop_pre_header
    _
  $region3: #{model_builder_forward.4} parent=0 // loop_header
    %s9 = sphi 0, %s13
    %p10 = scmp.ge.s32.totalorder %s9, 4
    %s16 = sphi 0, %s28
    %s17 = sphi 0, %s24
    %s18 = sphi 0, %s16
    %s19 = sphi 0, %s17
    %s20 = sphi 0, %s18
    %s21 = sphi 0, %s19
    %s31 = sphi 0, %s33
    %s34 = sphi 0, %s31
    %s35 = sphi 0, %s34
    %s51 = sphi 0, %s35
    %s57 = sphi 0, %s59
    %s60 = sphi 0, %s57
    %s61 = sphi 0, %s60
    %s77 = sphi 0, %s61
    %s83 = sphi 0, %s85
    %s86 = sphi 0, %s83
    %s87 = sphi 0, %s86
    %s103 = sphi 0, %s87
    %s111 = sphi 0, %s113
    %s114 = sphi 0, %s111
    %s115 = sphi 0, %s114
    %s131 = sphi 0, %s115
  $region4: #{model_builder_forward.4} parent=0 // loop_header_branch
    %12 = sbr.rel (%p10) target = $region8
  $region5: #{model_builder_forward.4} parent=0 // loop_body
    %s14 = ssub.s32 %s9, 1
    %s15 = ssub.s32 %s9, 2
    %s22 = sadd.s32 1, %s17
    %p23 = scmp.ge.s32.totalorder %s22, 1
    %s24 = scalar_select %p23, 0, %s22
    %s25 = sadd.s32 1, %s16
    %s26 = scalar_select %p23, %s25, %s16
    %p27 = scmp.ge.s32.totalorder %s26, 2
    %s28 = scalar_select %p27, 0, %s26
    %s29 = ssub.s32 %s16, %s28
    %p30 = scmp.eq.s32.totalorder %s29, 0
    %s32 = sadd.s32 %s31, 1
    %s33 = scalar_select %p30, %s31, %s32
    %p36 = pneg %p30
    %p37 = scmp.eq.s32.totalorder %s9, 1
    %p38 = por %p36, %p37
    %p39 = scmp.ne.s32.totalorder %s31, %s34
    %p40 = scmp.eq.s32.totalorder %s9, 0
    %p41 = por %p39, %p40
    %p42 = scmp.ne.s32.totalorder %s31, %s34
    %p43 = scmp.eq.s32.totalorder %s14, 1
    %p44 = por %p42, %p43
    %p45 = scmp.ne.s32.totalorder %s34, %s35
    %p46 = scmp.eq.s32.totalorder %s14, 0
    %p47 = por %p45, %p46
    %p48 = scmp.ne.s32.totalorder %s34, %s35
    %p49 = scmp.eq.s32.totalorder %s15, 1
    %p50 = por %p48, %p49
    %p52 = scmp.ne.s32.totalorder %s35, %s51
    %p53 = scmp.eq.s32.totalorder %s15, 0
    %p54 = por %p52, %p53
    %s55 = ssub.s32 %s17, %s24
    %p56 = scmp.eq.s32.totalorder %s55, 0
    %s58 = sadd.s32 %s57, 1
    %s59 = scalar_select %p56, %s57, %s58
    %p62 = pneg %p56
    %p63 = scmp.eq.s32.totalorder %s9, 1
    %p64 = por %p62, %p63
    %p65 = scmp.ne.s32.totalorder %s57, %s60
    %p66 = scmp.eq.s32.totalorder %s9, 0
    %p67 = por %p65, %p66
    %p68 = scmp.ne.s32.totalorder %s57, %s60
    %p69 = scmp.eq.s32.totalorder %s14, 1
    %p70 = por %p68, %p69
    %p71 = scmp.ne.s32.totalorder %s60, %s61
    %p72 = scmp.eq.s32.totalorder %s14, 0
    %p73 = por %p71, %p72
    %p74 = scmp.ne.s32.totalorder %s60, %s61
    %p75 = scmp.eq.s32.totalorder %s15, 1
    %p76 = por %p74, %p75
    %p78 = scmp.ne.s32.totalorder %s61, %s77
    %p79 = scmp.eq.s32.totalorder %s15, 0
    %p80 = por %p78, %p79
    %s81 = ssub.s32 %s17, %s24
    %p82 = scmp.eq.s32.totalorder %s81, 0
    %s84 = sadd.s32 %s83, 1
    %s85 = scalar_select %p82, %s83, %s84
    %p88 = pneg %p82
    %p89 = scmp.eq.s32.totalorder %s9, 1
    %p90 = por %p88, %p89
    %p91 = scmp.ne.s32.totalorder %s83, %s86
    %p92 = scmp.eq.s32.totalorder %s9, 0
    %p93 = por %p91, %p92
    %p94 = scmp.ne.s32.totalorder %s83, %s86
    %p95 = scmp.eq.s32.totalorder %s14, 1
    %p96 = por %p94, %p95
    %p97 = scmp.ne.s32.totalorder %s86, %s87
    %p98 = scmp.eq.s32.totalorder %s14, 0
    %p99 = por %p97, %p98
    %p100 = scmp.ne.s32.totalorder %s86, %s87
    %p101 = scmp.eq.s32.totalorder %s15, 1
    %p102 = por %p100, %p101
    %p104 = scmp.ne.s32.totalorder %s87, %s103
    %p105 = scmp.eq.s32.totalorder %s15, 0
    %p106 = por %p104, %p105
    %s107 = ssub.s32 %s16, %s28
    %s108 = ssub.s32 %s17, %s24
    %s109 = sor.u32 %s107, %s108
    %p110 = scmp.eq.s32.totalorder %s109, 0
    %s112 = sadd.s32 %s111, 1
    %s113 = scalar_select %p110, %s111, %s112
    %p116 = pneg %p110
    %p117 = scmp.eq.s32.totalorder %s9, 1
    %p118 = por %p116, %p117
    %p119 = scmp.ne.s32.totalorder %s111, %s114
    %p120 = scmp.eq.s32.totalorder %s9, 0
    %p121 = por %p119, %p120
    %p122 = scmp.ne.s32.totalorder %s111, %s114
    %p123 = scmp.eq.s32.totalorder %s14, 1
    %p124 = por %p122, %p123
    %p125 = scmp.ne.s32.totalorder %s114, %s115
    %p126 = scmp.eq.s32.totalorder %s14, 0
    %p127 = por %p125, %p126
    %p128 = scmp.ne.s32.totalorder %s114, %s115
    %p129 = scmp.eq.s32.totalorder %s15, 1
    %p130 = por %p128, %p129
    %p132 = scmp.ne.s32.totalorder %s115, %s131
    %p133 = scmp.eq.s32.totalorder %s15, 0
    %p134 = por %p132, %p133
    %p135 = scmp.le.s32.totalorder 1, %s9
    %p136 = scmp.lt.s32.totalorder %s9, 3
    %p137 = pnand %p135, %p136
    %p138 = pneg %p137
    // Predicated region
    $region9: #{model_builder_forward.4} parent=5 // pred_check
      _
    $region10: #{model_builder_forward.4} parent=5 // pred_check_branch
      %140 = sbr.rel (%p137) target = $region12
    $region11: #{model_builder_forward.4} parent=5 // pred_region
      %s141 = ssub.s32 %s9, 1
      // Predicated region
      $region13: #{model_builder_forward.4} parent=11 // pred_check
        %p142 = pneg %p73
      $region14: #{model_builder_forward.4} parent=11 // pred_check_branch
        %144 = sbr.rel (%p142) target = $region16
      $region15: #{model_builder_forward.4} parent=11 // pred_region
        %p145 = scmp.lt.s32.totalorder %s19, 0
        %s146 = scalar_select %p145, %s19, 0
        %s147 = smul.addr %s146, 4
        %s148 = scalar_lea.vmem %s1, %s147
      $region16: #{model_builder_forward.4} parent=11 // pred_fallthru
        _
      // Predicated region
      $region17: #{model_builder_forward.4} parent=11 // pred_check
        %p149 = pneg %p99
      $region18: #{model_builder_forward.4} parent=11 // pred_check_branch
        %151 = sbr.rel (%p149) target = $region20
      $region19: #{model_builder_forward.4} parent=11 // pred_region
        %p152 = scmp.lt.s32.totalorder %s19, 0
        %s153 = scalar_select %p152, %s19, 0
        %s154 = scalar_lea.vmem %s2, %s153
      $region20: #{model_builder_forward.4} parent=11 // pred_fallthru
        _
    $region12: #{model_builder_forward.4} parent=5 // pred_fallthru
      _
    %p155 = scmp.lt.s32.totalorder %s9, 2
    // Predicated region
    $region21: #{model_builder_forward.4} parent=5 // pred_check
      %p156 = pneg %p155
    $region22: #{model_builder_forward.4} parent=5 // pred_check_branch
      %158 = sbr.rel (%p156) target = $region24
    $region23: #{model_builder_forward.4} parent=5 // pred_region
      // Predicated region
      $region25: #{model_builder_forward.4} parent=23 // pred_check
        %p159 = pneg %p41
      $region26: #{model_builder_forward.4} parent=23 // pred_check_branch
        %161 = sbr.rel (%p159) target = $region28
      $region27: #{model_builder_forward.4} parent=23 // pred_region
        %s162 = smul.u32 32, %s16
        %p163 = scmp.lt.s32.totalorder %s162, 63
        %s164 = scalar_select %p163, %s162, 63
        %s165 = smul.addr %s164, 2
        %s166 = smul.addr %s165, 4
        %s167 = scalar_lea.vmem %s0, %s166
        %s168 = smul.u32 32, %s16
      $region28: #{model_builder_forward.4} parent=23 // pred_fallthru
        _
    $region24: #{model_builder_forward.4} parent=5 // pred_fallthru
      _
    %p169 = scmp.le.s32.totalorder 1, %s9
    %p170 = scmp.lt.s32.totalorder %s9, 3
    %p171 = pnand %p169, %p170
    %p172 = pneg %p171
    // Predicated region
    $region29: #{model_builder_forward.4} parent=5 // pred_check
      _
    $region30: #{model_builder_forward.4} parent=5 // pred_check_branch
      %174 = sbr.rel (%p171) target = $region32
    $region31: #{model_builder_forward.4} parent=5 // pred_region
      %s175 = ssub.s32 %s9, 1
      %s176 = smul.u32 32, %s18
      %p177 = scmp.lt.s32.totalorder %s176, 63
      %s178 = scalar_select %p177, %s176, 63
      %s179 = smul.addr %s178, 2
      %s180 = smul.addr %s179, 4
      %s181 = scalar_lea.vmem %s0, %s180
      %p182 = pneg %p47
      %p183 = pneg %p44
      %p184 = scmp.lt.s32.totalorder %s19, 0
      %s185 = scalar_select %p184, %s19, 0
      %s186 = smul.addr %s185, 4
      %s187 = scalar_lea.vmem %s1, %s186
      %p188 = pneg %p73
      %p189 = pneg %p70
      %p190 = scmp.lt.s32.totalorder %s19, 0
      %s191 = scalar_select %p190, %s19, 0
      %s192 = scalar_lea.vmem %s2, %s191
      %p193 = pneg %p99
      %p194 = pneg %p96
      %p195 = pneg %p127
      %p196 = pneg %p124
      %s197 = smul.u32 32, %s18
      %p198 = scmp.lt.s32.totalorder %s197, 63
      %s199 = scalar_select %p198, %s197, 63
      %p200 = scmp.lt.s32.totalorder %s19, 0
      %s201 = scalar_select %p200, %s19, 0
      %s202 = sadd.s32 %s201, %s199
      %s203 = smul.addr %s202, 4
      %s204 = scalar_lea.vmem %s3, %s203
      %s205 = smul.u32 32, %s18
      %p206 = scmp.lt.s32.totalorder %s205, 63
      %s207 = scalar_select %p206, %s205, 63
      %s208 = smul.addr %s207, 2
      %s209 = smul.addr %s208, 4
      %s210 = scalar_lea.vmem %s0, %s209
      %s211 = smul.u32 32, %s18
      %p212 = scmp.lt.s32.totalorder %s19, 0
      %s213 = scalar_select %p212, %s19, 0
      %s214 = smul.addr %s213, 4
      %s215 = scalar_lea.vmem %s1, %s214
      %p216 = scmp.lt.s32.totalorder %s19, 0
      %s217 = scalar_select %p216, %s19, 0
      %s218 = scalar_lea.vmem %s2, %s217
      %s219 = smul.u32 32, %s18
      %p220 = scmp.lt.s32.totalorder %s219, 63
      %s221 = scalar_select %p220, %s219, 63
      %p222 = scmp.lt.s32.totalorder %s19, 0
      %s223 = scalar_select %p222, %s19, 0
      %s224 = sadd.s32 %s223, %s221
      %s225 = smul.addr %s224, 4
      %s226 = scalar_lea.vmem %s3, %s225
      %s227 = smul.u32 32, %s18
      %v229 = vld [vmem:[%s210] sm:$0xff]
      %v230 = vld [vmem:[%s210 + $0x8] sm:$0xff]
      %v231 = vld [vmem:[%s210 + $0x10] sm:$0xff]
      %v232 = vld [vmem:[%s210 + $0x18] sm:$0xff]
      %v233 = vld [vmem:[%s210 + $0x20] sm:$0xff]
      %v234 = vld [vmem:[%s210 + $0x28] sm:$0xff]
      %v235 = vld [vmem:[%s210 + $0x30] sm:$0xff]
      %v236 = vld [vmem:[%s210 + $0x38] sm:$0xff]
      %v237 = vld [vmem:[%s210 + $0x40] sm:$0xff]
      %v238 = vld [vmem:[%s210 + $0x48] sm:$0xff]
      %v239 = vld [vmem:[%s210 + $0x50] sm:$0xff]
      %v240 = vld [vmem:[%s210 + $0x58] sm:$0xff]
      %v241 = vld [vmem:[%s210 + $0x60] sm:$0xff]
      %v242 = vld [vmem:[%s210 + $0x68] sm:$0xff]
      %v243 = vld [vmem:[%s210 + $0x70] sm:$0xff]
      %v244 = vld [vmem:[%s210 + $0x78] sm:$0xff]
      %v245 = vld [vmem:[%s210 + $0x80] sm:$0xff]
      %v246 = vld [vmem:[%s210 + $0x88] sm:$0xff]
      %v247 = vld [vmem:[%s210 + $0x90] sm:$0xff]
      %v248 = vld [vmem:[%s210 + $0x98] sm:$0xff]
      %v249 = vld [vmem:[%s210 + $0xa0] sm:$0xff]
      %v250 = vld [vmem:[%s210 + $0xa8] sm:$0xff]
      %v251 = vld [vmem:[%s210 + $0xb0] sm:$0xff]
      %v252 = vld [vmem:[%s210 + $0xb8] sm:$0xff]
      %v253 = vld [vmem:[%s210 + $0xc0] sm:$0xff]
      %v254 = vld [vmem:[%s210 + $0xc8] sm:$0xff]
      %v255 = vld [vmem:[%s210 + $0xd0] sm:$0xff]
      %v256 = vld [vmem:[%s210 + $0xd8] sm:$0xff]
      %v257 = vld [vmem:[%s210 + $0xe0] sm:$0xff]
      %v258 = vld [vmem:[%s210 + $0xe8] sm:$0xff]
      %v259 = vld [vmem:[%s210 + $0xf0] sm:$0xff]
      %v260 = vld [vmem:[%s210 + $0xf8] sm:$0xff]
      %v261 = vld [vmem:[%s215] sm:$0xf]
      %v262 = vld [vmem:[%s215 + $0x4] sm:$0xf]
      %v263 = vld [vmem:[%s215 + $0x8] sm:$0xf]
      %v264 = vld [vmem:[%s215 + $0xc] sm:$0xf]
      %v265 = vld [vmem:[%s215 + $0x10] sm:$0xf]
      %v266 = vld [vmem:[%s215 + $0x14] sm:$0xf]
      %v267 = vld [vmem:[%s215 + $0x18] sm:$0xf]
      %v268 = vld [vmem:[%s215 + $0x1c] sm:$0xf]
      %v269 = vld [vmem:[%s215 + $0x20] sm:$0xf]
      %v270 = vld [vmem:[%s215 + $0x24] sm:$0xf]
      %v271 = vld [vmem:[%s215 + $0x28] sm:$0xf]
      %v272 = vld [vmem:[%s215 + $0x2c] sm:$0xf]
      %v273 = vld [vmem:[%s215 + $0x30] sm:$0xf]
      %v274 = vld [vmem:[%s215 + $0x34] sm:$0xf]
      %v275 = vld [vmem:[%s215 + $0x38] sm:$0xf]
      %v276 = vld [vmem:[%s215 + $0x3c] sm:$0xf]
      %v277 = vld [vmem:[%s215 + $0x40] sm:$0xf]
      %v278 = vld [vmem:[%s215 + $0x44] sm:$0xf]
      %v279 = vld [vmem:[%s218] sm:$0x1]
      %v281 = vlaneseq
      %v282 = vshrl.u32 %v281, 7
      %v283 = vsub.s32 0, %v282
      %v284 = vrot.slane %v279, %v283
      %v318 = vunpack.c.l.b16 %v229
      %v319 = vunpack.c.h.b16 %v229
      %v320 = vunpack.c.l.b16 %v230
      %v321 = vunpack.c.h.b16 %v230
      %v322 = vunpack.c.l.b16 %v231
      %v323 = vunpack.c.h.b16 %v231
      %v324 = vunpack.c.l.b16 %v232
      %v325 = vunpack.c.h.b16 %v232
      %v326 = vunpack.c.l.b16 %v233
      %v327 = vunpack.c.h.b16 %v233
      %v328 = vunpack.c.l.b16 %v234
      %v329 = vunpack.c.h.b16 %v234
      %v330 = vunpack.c.l.b16 %v235
      %v331 = vunpack.c.h.b16 %v235
      %v332 = vunpack.c.l.b16 %v236
      %v333 = vunpack.c.h.b16 %v236
      %v334 = vunpack.c.l.b16 %v237
      %v335 = vunpack.c.h.b16 %v237
      %v336 = vunpack.c.l.b16 %v238
      %v337 = vunpack.c.h.b16 %v238
      %v338 = vunpack.c.l.b16 %v239
      %v339 = vunpack.c.h.b16 %v239
      %v340 = vunpack.c.l.b16 %v240
      %v341 = vunpack.c.h.b16 %v240
      %v342 = vunpack.c.l.b16 %v241
      %v343 = vunpack.c.h.b16 %v241
      %v344 = vunpack.c.l.b16 %v242
      %v345 = vunpack.c.h.b16 %v242
      %v346 = vunpack.c.l.b16 %v243
      %v347 = vunpack.c.h.b16 %v243
      %v348 = vunpack.c.l.b16 %v244
      %v349 = vunpack.c.h.b16 %v244
      %v350 = vunpack.c.l.b16 %v245
      %v351 = vunpack.c.h.b16 %v245
      %v352 = vunpack.c.l.b16 %v246
      %v353 = vunpack.c.h.b16 %v246
      %v354 = vunpack.c.l.b16 %v247
      %v355 = vunpack.c.h.b16 %v247
      %v356 = vunpack.c.l.b16 %v248
      %v357 = vunpack.c.h.b16 %v248
      %v358 = vunpack.c.l.b16 %v249
      %v359 = vunpack.c.h.b16 %v249
      %v360 = vunpack.c.l.b16 %v250
      %v361 = vunpack.c.h.b16 %v250
      %v362 = vunpack.c.l.b16 %v251
      %v363 = vunpack.c.h.b16 %v251
      %v364 = vunpack.c.l.b16 %v252
      %v365 = vunpack.c.h.b16 %v252
      %v366 = vunpack.c.l.b16 %v253
      %v367 = vunpack.c.h.b16 %v253
      %v368 = vunpack.c.l.b16 %v254
      %v369 = vunpack.c.h.b16 %v254
      %v370 = vunpack.c.l.b16 %v255
      %v371 = vunpack.c.h.b16 %v255
      %v372 = vunpack.c.l.b16 %v256
      %v373 = vunpack.c.h.b16 %v256
      %v374 = vunpack.c.l.b16 %v257
      %v375 = vunpack.c.h.b16 %v257
      %v376 = vunpack.c.l.b16 %v258
      %v377 = vunpack.c.h.b16 %v258
      %v378 = vunpack.c.l.b16 %v259
      %v379 = vunpack.c.h.b16 %v259
      %v380 = vunpack.c.l.b16 %v260
      %v381 = vunpack.c.h.b16 %v260
      %v382 = vpack.c.b16 %v320, %v318
      %v383 = vpack.c.b16 %v321, %v319
      %v384 = vpack.c.b16 %v324, %v322
      %v385 = vpack.c.b16 %v325, %v323
      %v386 = vpack.c.b16 %v328, %v326
      %v387 = vpack.c.b16 %v329, %v327
      %v388 = vpack.c.b16 %v332, %v330
      %v389 = vpack.c.b16 %v333, %v331
      %v390 = vpack.c.b16 %v336, %v334
      %v391 = vpack.c.b16 %v337, %v335
      %v392 = vpack.c.b16 %v340, %v338
      %v393 = vpack.c.b16 %v341, %v339
      %v394 = vpack.c.b16 %v344, %v342
      %v395 = vpack.c.b16 %v345, %v343
      %v396 = vpack.c.b16 %v348, %v346
      %v397 = vpack.c.b16 %v349, %v347
      %v398 = vpack.c.b16 %v352, %v350
      %v399 = vpack.c.b16 %v353, %v351
      %v400 = vpack.c.b16 %v356, %v354
      %v401 = vpack.c.b16 %v357, %v355
      %v402 = vpack.c.b16 %v360, %v358
      %v403 = vpack.c.b16 %v361, %v359
      %v404 = vpack.c.b16 %v364, %v362
      %v405 = vpack.c.b16 %v365, %v363
      %v406 = vpack.c.b16 %v368, %v366
      %v407 = vpack.c.b16 %v369, %v367
      %v408 = vpack.c.b16 %v372, %v370
      %v409 = vpack.c.b16 %v373, %v371
      %v410 = vpack.c.b16 %v376, %v374
      %v411 = vpack.c.b16 %v377, %v375
      %v412 = vpack.c.b16 %v380, %v378
      %v413 = vpack.c.b16 %v381, %v379
      %v448 = vunpack.c.l.b16 %v261
      %v449 = vunpack.c.l.b16 %v262
      %v450 = vunpack.c.l.b16 %v263
      %v451 = vunpack.c.l.b16 %v264
      %v452 = vunpack.c.l.b16 %v265
      %v453 = vunpack.c.l.b16 %v266
      %v454 = vunpack.c.l.b16 %v267
      %v455 = vunpack.c.l.b16 %v268
      %v456 = vunpack.c.l.b16 %v269
      %v457 = vunpack.c.l.b16 %v270
      %v458 = vunpack.c.l.b16 %v271
      %v459 = vunpack.c.l.b16 %v272
      %v460 = vunpack.c.l.b16 %v273
      %v461 = vunpack.c.l.b16 %v274
      %v462 = vunpack.c.l.b16 %v275
      %v463 = vunpack.c.l.b16 %v276
      %v464 = vunpack.c.l.b16 %v277
      %v465 = vunpack.c.l.b16 %v278
      %v466 = vpack.c.b16 %v449, %v448
      %v467 = vpack.c.b16 %v451, %v450
      %v468 = vpack.c.b16 %v453, %v452
      %v469 = vpack.c.b16 %v455, %v454
      %v470 = vpack.c.b16 %v457, %v456
      %v471 = vpack.c.b16 %v459, %v458
      %v472 = vpack.c.b16 %v461, %v460
      %v473 = vpack.c.b16 %v463, %v462
      %v474 = vpack.c.b16 %v465, %v464
      %vm484 = vcmask 130048
      %v486 = vsel %vm484, %v383, 0
      %v489 = vsel %vm484, %v385, 0
      %v492 = vsel %vm484, %v387, 0
      %v495 = vsel %vm484, %v389, 0
      %v498 = vsel %vm484, %v391, 0
      %v501 = vsel %vm484, %v393, 0
      %v504 = vsel %vm484, %v395, 0
      %v507 = vsel %vm484, %v397, 0
      %v510 = vsel %vm484, %v399, 0
      %v513 = vsel %vm484, %v401, 0
      %v516 = vsel %vm484, %v403, 0
      %v519 = vsel %vm484, %v405, 0
      %v522 = vsel %vm484, %v407, 0
      %v525 = vsel %vm484, %v409, 0
      %v528 = vsel %vm484, %v411, 0
      %v531 = vsel %vm484, %v413, 0
      %533 = vmatprep.subr.bf16.mxu0 0
      %534 = vmatpush1.bf16.msra.mxu0 %v466
      %535 = vmatprep.subr.bf16.mxu0 0
      %536 = vmatpush1.bf16.msra.mxu0 %v467
      %537 = vmatprep.subr.bf16.mxu0 0
      %538 = vmatpush1.bf16.msra.mxu0 %v468
      %539 = vmatprep.subr.bf16.mxu0 0
      %540 = vmatpush1.bf16.msra.mxu0 %v469
      %541 = vmatprep.subr.bf16.mxu0 0
      %542 = vmatpush1.bf16.msra.mxu0 %v470
      %543 = vmatprep.subr.bf16.mxu0 0
      %544 = vmatpush1.bf16.msra.mxu0 %v471
      %545 = vmatprep.subr.bf16.mxu0 0
      %546 = vmatpush1.bf16.msra.mxu0 %v472
      %547 = vmatprep.subr.bf16.mxu0 0
      %548 = vmatpush1.bf16.msra.mxu0 %v473
      %549 = vmatprep.subr.bf16.mxu0 0
      %550 = vmatpush1.bf16.msra.mxu0 %v474
      %551 = vmatprep.subr.bf16.mxu0 0
      %552 = vmatpush1.bf16.msra.mxu0 0
      %553 = vmatprep.subr.bf16.mxu0 0
      %554 = vmatpush1.bf16.msra.mxu0 0
      %555 = vmatprep.subr.bf16.mxu0 0
      %556 = vmatpush1.bf16.msra.mxu0 0
      %557 = vmatprep.subr.bf16.mxu0 0
      %558 = vmatpush1.bf16.msra.mxu0 0
      %559 = vmatprep.subr.bf16.mxu0 0
      %560 = vmatpush1.bf16.msra.mxu0 0
      %561 = vmatprep.subr.bf16.mxu0 0
      %562 = vmatpush1.bf16.msra.mxu0 0
      %563 = vmatprep.subr.bf16.mxu0 0
      %564 = vmatpush1.bf16.msra.mxu0 0
      %565 = vmatprep.mubr.bf16.mxu0 %v486
      %566 = vmatmul.mubr.bf16.gmra.mrb[0].mxu0 %v382
      %v567 = vpop.f32.mrb[0].mxu0
      %v568 = vadd.f32 %v284, %v567
      %v569 = vpop.f32.mrb[0].mxu0
      %v570 = vpop.f32.mrb[0].mxu0
      %v571 = vadd.f32 %v284, %v570
      %v572 = vpop.f32.mrb[0].mxu0
      %573 = vmatprep.mubr.bf16.mxu0 %v489
      %574 = vmatmul.mubr.bf16.gmra.mrb[0].mxu0 %v384
      %v575 = vpop.f32.mrb[0].mxu0
      %v576 = vadd.f32 %v284, %v575
      %v577 = vpop.f32.mrb[0].mxu0
      %v578 = vpop.f32.mrb[0].mxu0
      %v579 = vadd.f32 %v284, %v578
      %v580 = vpop.f32.mrb[0].mxu0
      %581 = vmatprep.mubr.bf16.mxu0 %v492
      %582 = vmatmul.mubr.bf16.gmra.mrb[0].mxu0 %v386
      %v583 = vpop.f32.mrb[0].mxu0
      %v584 = vadd.f32 %v284, %v583
      %v585 = vpop.f32.mrb[0].mxu0
      %v586 = vpop.f32.mrb[0].mxu0
      %v587 = vadd.f32 %v284, %v586
      %v588 = vpop.f32.mrb[0].mxu0
      %589 = vmatprep.mubr.bf16.mxu0 %v495
      %590 = vmatmul.mubr.bf16.gmra.mrb[0].mxu0 %v388
      %v591 = vpop.f32.mrb[0].mxu0
      %v592 = vadd.f32 %v284, %v591
      %v593 = vpop.f32.mrb[0].mxu0
      %v594 = vpop.f32.mrb[0].mxu0
      %v595 = vadd.f32 %v284, %v594
      %v596 = vpop.f32.mrb[0].mxu0
      %597 = vmatprep.mubr.bf16.mxu0 %v498
      %598 = vmatmul.mubr.bf16.gmra.mrb[0].mxu0 %v390
      %v599 = vpop.f32.mrb[0].mxu0
      %v600 = vadd.f32 %v284, %v599
      %v601 = vpop.f32.mrb[0].mxu0
      %v602 = vpop.f32.mrb[0].mxu0
      %v603 = vadd.f32 %v284, %v602
      %v604 = vpop.f32.mrb[0].mxu0
      %605 = vmatprep.mubr.bf16.mxu0 %v501
      %606 = vmatmul.mubr.bf16.gmra.mrb[0].mxu0 %v392
      %v607 = vpop.f32.mrb[0].mxu0
      %v608 = vadd.f32 %v284, %v607
      %v609 = vpop.f32.mrb[0].mxu0
      %v610 = vpop.f32.mrb[0].mxu0
      %v611 = vadd.f32 %v284, %v610
      %v612 = vpop.f32.mrb[0].mxu0
      %613 = vmatprep.mubr.bf16.mxu0 %v504
      %614 = vmatmul.mubr.bf16.gmra.mrb[0].mxu0 %v394
      %v615 = vpop.f32.mrb[0].mxu0
      %v616 = vadd.f32 %v284, %v615
      %v617 = vpop.f32.mrb[0].mxu0
      %v618 = vpop.f32.mrb[0].mxu0
      %v619 = vadd.f32 %v284, %v618
      %v620 = vpop.f32.mrb[0].mxu0
      %621 = vmatprep.mubr.bf16.mxu0 %v507
      %622 = vmatmul.mubr.bf16.gmra.mrb[0].mxu0 %v396
      %v623 = vpop.f32.mrb[0].mxu0
      %v624 = vadd.f32 %v284, %v623
      %v625 = vpop.f32.mrb[0].mxu0
      %v626 = vpop.f32.mrb[0].mxu0
      %v627 = vadd.f32 %v284, %v626
      %v628 = vpop.f32.mrb[0].mxu0
      %629 = vmatprep.mubr.bf16.mxu0 %v510
      %630 = vmatmul.mubr.bf16.gmra.mrb[0].mxu0 %v398
      %v631 = vpop.f32.mrb[0].mxu0
      %v632 = vadd.f32 %v284, %v631
      %v633 = vpop.f32.mrb[0].mxu0
      %v634 = vpop.f32.mrb[0].mxu0
      %v635 = vadd.f32 %v284, %v634
      %v636 = vpop.f32.mrb[0].mxu0
      %637 = vmatprep.mubr.bf16.mxu0 %v513
      %638 = vmatmul.mubr.bf16.gmra.mrb[0].mxu0 %v400
      %v639 = vpop.f32.mrb[0].mxu0
      %v640 = vadd.f32 %v284, %v639
      %v641 = vpop.f32.mrb[0].mxu0
      %v642 = vpop.f32.mrb[0].mxu0
      %v643 = vadd.f32 %v284, %v642
      %v644 = vpop.f32.mrb[0].mxu0
      %645 = vmatprep.mubr.bf16.mxu0 %v516
      %646 = vmatmul.mubr.bf16.gmra.mrb[0].mxu0 %v402
      %v647 = vpop.f32.mrb[0].mxu0
      %v648 = vadd.f32 %v284, %v647
      %v649 = vpop.f32.mrb[0].mxu0
      %v650 = vpop.f32.mrb[0].mxu0
      %v651 = vadd.f32 %v284, %v650
      %v652 = vpop.f32.mrb[0].mxu0
      %653 = vmatprep.mubr.bf16.mxu0 %v519
      %654 = vmatmul.mubr.bf16.gmra.mrb[0].mxu0 %v404
      %v655 = vpop.f32.mrb[0].mxu0
      %v656 = vadd.f32 %v284, %v655
      %v657 = vpop.f32.mrb[0].mxu0
      %v658 = vpop.f32.mrb[0].mxu0
      %v659 = vadd.f32 %v284, %v658
      %v660 = vpop.f32.mrb[0].mxu0
      %661 = vmatprep.mubr.bf16.mxu0 %v522
      %662 = vmatmul.mubr.bf16.gmra.mrb[0].mxu0 %v406
      %v663 = vpop.f32.mrb[0].mxu0
      %v664 = vadd.f32 %v284, %v663
      %v665 = vpop.f32.mrb[0].mxu0
      %v666 = vpop.f32.mrb[0].mxu0
      %v667 = vadd.f32 %v284, %v666
      %v668 = vpop.f32.mrb[0].mxu0
      %669 = vmatprep.mubr.bf16.mxu0 %v525
      %670 = vmatmul.mubr.bf16.gmra.mrb[0].mxu0 %v408
      %v671 = vpop.f32.mrb[0].mxu0
      %v672 = vadd.f32 %v284, %v671
      %v673 = vpop.f32.mrb[0].mxu0
      %v674 = vpop.f32.mrb[0].mxu0
      %v675 = vadd.f32 %v284, %v674
      %v676 = vpop.f32.mrb[0].mxu0
      %677 = vmatprep.mubr.bf16.mxu0 %v528
      %678 = vmatmul.mubr.bf16.gmra.mrb[0].mxu0 %v410
      %v679 = vpop.f32.mrb[0].mxu0
      %v680 = vadd.f32 %v284, %v679
      %v681 = vpop.f32.mrb[0].mxu0
      %v682 = vpop.f32.mrb[0].mxu0
      %v683 = vadd.f32 %v284, %v682
      %v684 = vpop.f32.mrb[0].mxu0
      %685 = vmatprep.mubr.bf16.mxu0 %v531
      %686 = vmatmul.mubr.bf16.gmra.mrb[0].mxu0 %v412
      %v687 = vpop.f32.mrb[0].mxu0
      %v688 = vadd.f32 %v284, %v687
      %v689 = vpop.f32.mrb[0].mxu0
      %v690 = vpop.f32.mrb[0].mxu0
      %v691 = vadd.f32 %v284, %v690
      %v692 = vpop.f32.mrb[0].mxu0
      %693 = vdwg.mxu0
      %v694 = vmax.f32 %v568, 0.0
      %v695 = vmax.f32 %v571, 0.0
      %v696 = vmax.f32 %v576, 0.0
      %v697 = vmax.f32 %v579, 0.0
      %v698 = vmax.f32 %v584, 0.0
      %v699 = vmax.f32 %v587, 0.0
      %v700 = vmax.f32 %v592, 0.0
      %v701 = vmax.f32 %v595, 0.0
      %v702 = vmax.f32 %v600, 0.0
      %v703 = vmax.f32 %v603, 0.0
      %v704 = vmax.f32 %v608, 0.0
      %v705 = vmax.f32 %v611, 0.0
      %v706 = vmax.f32 %v616, 0.0
      %v707 = vmax.f32 %v619, 0.0
      %v708 = vmax.f32 %v624, 0.0
      %v709 = vmax.f32 %v627, 0.0
      %v710 = vmax.f32 %v632, 0.0
      %v711 = vmax.f32 %v635, 0.0
      %v712 = vmax.f32 %v640, 0.0
      %v713 = vmax.f32 %v643, 0.0
      %v714 = vmax.f32 %v648, 0.0
      %v715 = vmax.f32 %v651, 0.0
      %v716 = vmax.f32 %v656, 0.0
      %v717 = vmax.f32 %v659, 0.0
      %v718 = vmax.f32 %v664, 0.0
      %v719 = vmax.f32 %v667, 0.0
      %v720 = vmax.f32 %v672, 0.0
      %v721 = vmax.f32 %v675, 0.0
      %v722 = vmax.f32 %v680, 0.0
      %v723 = vmax.f32 %v683, 0.0
      %v724 = vmax.f32 %v688, 0.0
      %v725 = vmax.f32 %v691, 0.0
      %v726 = vpack.c.bf16 %v695, %v694
      %v727 = vpack.c.bf16 %v697, %v696
      %v728 = vpack.c.bf16 %v699, %v698
      %v729 = vpack.c.bf16 %v701, %v700
      %v730 = vpack.c.bf16 %v703, %v702
      %v731 = vpack.c.bf16 %v705, %v704
      %v732 = vpack.c.bf16 %v707, %v706
      %v733 = vpack.c.bf16 %v709, %v708
      %v734 = vpack.c.bf16 %v711, %v710
      %v735 = vpack.c.bf16 %v713, %v712
      %v736 = vpack.c.bf16 %v715, %v714
      %v737 = vpack.c.bf16 %v717, %v716
      %v738 = vpack.c.bf16 %v719, %v718
      %v739 = vpack.c.bf16 %v721, %v720
      %v740 = vpack.c.bf16 %v723, %v722
      %v741 = vpack.c.bf16 %v725, %v724
      %v758 = vunpack.c.l.b16 %v726
      %v759 = vunpack.c.h.b16 %v726
      %v760 = vunpack.c.l.b16 %v727
      %v761 = vunpack.c.h.b16 %v727
      %v762 = vunpack.c.l.b16 %v728
      %v763 = vunpack.c.h.b16 %v728
      %v764 = vunpack.c.l.b16 %v729
      %v765 = vunpack.c.h.b16 %v729
      %v766 = vunpack.c.l.b16 %v730
      %v767 = vunpack.c.h.b16 %v730
      %v768 = vunpack.c.l.b16 %v731
      %v769 = vunpack.c.h.b16 %v731
      %v770 = vunpack.c.l.b16 %v732
      %v771 = vunpack.c.h.b16 %v732
      %v772 = vunpack.c.l.b16 %v733
      %v773 = vunpack.c.h.b16 %v733
      %v774 = vunpack.c.l.b16 %v734
      %v775 = vunpack.c.h.b16 %v734
      %v776 = vunpack.c.l.b16 %v735
      %v777 = vunpack.c.h.b16 %v735
      %v778 = vunpack.c.l.b16 %v736
      %v779 = vunpack.c.h.b16 %v736
      %v780 = vunpack.c.l.b16 %v737
      %v781 = vunpack.c.h.b16 %v737
      %v782 = vunpack.c.l.b16 %v738
      %v783 = vunpack.c.h.b16 %v738
      %v784 = vunpack.c.l.b16 %v739
      %v785 = vunpack.c.h.b16 %v739
      %v786 = vunpack.c.l.b16 %v740
      %v787 = vunpack.c.h.b16 %v740
      %v788 = vunpack.c.l.b16 %v741
      %v789 = vunpack.c.h.b16 %v741
      %v790 = vpack.c.b16 %v758, %v758
      %v791 = vpack.c.b16 %v759, %v759
      %v792 = vpack.c.b16 %v760, %v760
      %v793 = vpack.c.b16 %v761, %v761
      %v794 = vpack.c.b16 %v762, %v762
      %v795 = vpack.c.b16 %v763, %v763
      %v796 = vpack.c.b16 %v764, %v764
      %v797 = vpack.c.b16 %v765, %v765
      %v798 = vpack.c.b16 %v766, %v766
      %v799 = vpack.c.b16 %v767, %v767
      %v800 = vpack.c.b16 %v768, %v768
      %v801 = vpack.c.b16 %v769, %v769
      %v802 = vpack.c.b16 %v770, %v770
      %v803 = vpack.c.b16 %v771, %v771
      %v804 = vpack.c.b16 %v772, %v772
      %v805 = vpack.c.b16 %v773, %v773
      %v806 = vpack.c.b16 %v774, %v774
      %v807 = vpack.c.b16 %v775, %v775
      %v808 = vpack.c.b16 %v776, %v776
      %v809 = vpack.c.b16 %v777, %v777
      %v810 = vpack.c.b16 %v778, %v778
      %v811 = vpack.c.b16 %v779, %v779
      %v812 = vpack.c.b16 %v780, %v780
      %v813 = vpack.c.b16 %v781, %v781
      %v814 = vpack.c.b16 %v782, %v782
      %v815 = vpack.c.b16 %v783, %v783
      %v816 = vpack.c.b16 %v784, %v784
      %v817 = vpack.c.b16 %v785, %v785
      %v818 = vpack.c.b16 %v786, %v786
      %v819 = vpack.c.b16 %v787, %v787
      %v820 = vpack.c.b16 %v788, %v788
      %v821 = vpack.c.b16 %v789, %v789
      %854 = vst [vmem:[%s226] sm:$0xf] %v790
      %855 = vst [vmem:[%s226 + $0x4] sm:$0xf] %v791
      %856 = vst [vmem:[%s226 + $0x8] sm:$0xf] %v792
      %857 = vst [vmem:[%s226 + $0xc] sm:$0xf] %v793
      %858 = vst [vmem:[%s226 + $0x10] sm:$0xf] %v794
      %859 = vst [vmem:[%s226 + $0x14] sm:$0xf] %v795
      %860 = vst [vmem:[%s226 + $0x18] sm:$0xf] %v796
      %861 = vst [vmem:[%s226 + $0x1c] sm:$0xf] %v797
      %862 = vst [vmem:[%s226 + $0x20] sm:$0xf] %v798
      %863 = vst [vmem:[%s226 + $0x24] sm:$0xf] %v799
      %864 = vst [vmem:[%s226 + $0x28] sm:$0xf] %v800
      %865 = vst [vmem:[%s226 + $0x2c] sm:$0xf] %v801
      %866 = vst [vmem:[%s226 + $0x30] sm:$0xf] %v802
      %867 = vst [vmem:[%s226 + $0x34] sm:$0xf] %v803
      %868 = vst [vmem:[%s226 + $0x38] sm:$0xf] %v804
      %869 = vst [vmem:[%s226 + $0x3c] sm:$0xf] %v805
      %870 = vst [vmem:[%s226 + $0x40] sm:$0xf] %v806
      %871 = vst [vmem:[%s226 + $0x44] sm:$0xf] %v807
      %872 = vst [vmem:[%s226 + $0x48] sm:$0xf] %v808
      %873 = vst [vmem:[%s226 + $0x4c] sm:$0xf] %v809
      %874 = vst [vmem:[%s226 + $0x50] sm:$0xf] %v810
      %875 = vst [vmem:[%s226 + $0x54] sm:$0xf] %v811
      %876 = vst [vmem:[%s226 + $0x58] sm:$0xf] %v812
      %877 = vst [vmem:[%s226 + $0x5c] sm:$0xf] %v813
      %878 = vst [vmem:[%s226 + $0x60] sm:$0xf] %v814
      %879 = vst [vmem:[%s226 + $0x64] sm:$0xf] %v815
      %880 = vst [vmem:[%s226 + $0x68] sm:$0xf] %v816
      %881 = vst [vmem:[%s226 + $0x6c] sm:$0xf] %v817
      %882 = vst [vmem:[%s226 + $0x70] sm:$0xf] %v818
      %883 = vst [vmem:[%s226 + $0x74] sm:$0xf] %v819
      %884 = vst [vmem:[%s226 + $0x78] sm:$0xf] %v820
      %885 = vst [vmem:[%s226 + $0x7c] sm:$0xf] %v821
      %s886 = smul.u32 32, %s18
      %p887 = scmp.lt.s32.totalorder %s886, 63
      %s888 = scalar_select %p887, %s886, 63
      %p889 = scmp.lt.s32.totalorder %s19, 0
      %s890 = scalar_select %p889, %s19, 0
      %s891 = sadd.s32 %s890, %s888
      %s892 = smul.addr %s891, 4
      %s893 = scalar_lea.vmem %s3, %s892
      // Predicated region
      $region33: #{model_builder_forward.4} parent=31 // pred_check
        %p894 = pneg %p124
      $region34: #{model_builder_forward.4} parent=31 // pred_check_branch
        %896 = sbr.rel (%p894) target = $region36
      $region35: #{model_builder_forward.4} parent=31 // pred_region
        %s897 = smul.u32 32, %s18
      $region36: #{model_builder_forward.4} parent=31 // pred_fallthru
        _
    $region32: #{model_builder_forward.4} parent=5 // pred_fallthru
      _
    %p898 = scmp.le.s32.totalorder 2, %s9
    // Predicated region
    $region37: #{model_builder_forward.4} parent=5 // pred_check
      %p899 = pneg %p898
    $region38: #{model_builder_forward.4} parent=5 // pred_check_branch
      %901 = sbr.rel (%p899) target = $region40
    $region39: #{model_builder_forward.4} parent=5 // pred_region
      %s902 = ssub.s32 %s9, 2
      // Predicated region
      $region41: #{model_builder_forward.4} parent=39 // pred_check
        %p903 = pneg %p130
      $region42: #{model_builder_forward.4} parent=39 // pred_check_branch
        %905 = sbr.rel (%p903) target = $region44
      $region43: #{model_builder_forward.4} parent=39 // pred_region
        %s906 = smul.u32 32, %s20
        %p907 = scmp.lt.s32.totalorder %s906, 63
        %s908 = scalar_select %p907, %s906, 63
        %p909 = scmp.lt.s32.totalorder %s21, 0
        %s910 = scalar_select %p909, %s21, 0
        %s911 = sadd.s32 %s910, %s908
        %s912 = smul.addr %s911, 4
        %s913 = scalar_lea.vmem %s3, %s912
      $region44: #{model_builder_forward.4} parent=39 // pred_fallthru
        _
    $region40: #{model_builder_forward.4} parent=5 // pred_fallthru
      _
  $region6: #{model_builder_forward.4} parent=0 // loop_footer
    %s13 = sadd.s32 1, %s9
  $region7: #{model_builder_forward.4} parent=0 // loop_footer_branch
    %8 = sbr.rel target = $region3
  $region8: #{model_builder_forward.4} parent=0 // loop_exit
    _

// kernel: model_builder_forward.5
$region0: #{model_builder_forward.5}
  #allocation0 [shape = 'u32[]', space=smem, size = 0x4, offset = 0x4, fixed_abs, tag = 'smem constant byte address 0x4 - core index']
  #allocation1 [shape = 'u32[144,128]{1,0:T(1,128)}', space=vmem, size = 0x12000, scoped, tag = 'internal scratch']
  %s0 = inlined_call_operand.vmem [shape: bf16[2,32,25], index: 0, kind: input, shape index: {}]
  %s1 = inlined_call_operand.vmem [shape: bf16[2,25,32,128], index: 1, kind: input, shape index: {}]
  %s2 = inlined_call_operand.vmem [shape: f32[8,32], index: 2, kind: input, shape index: {}]
  %s3 = inlined_call_operand.vmem [shape: f32[8,1], index: 3, kind: input, shape index: {}]
  %s4 = inlined_call_operand.vmem [shape: f32[2,8,128], index: 4, kind: output, shape index: {}]
  %s5 = sld [smem:[#allocation0]]
  $region49: #{model_builder_forward.5} parent=0
    _
  %s7 = ssub.s32 1, %s5
  %s8 = scalar_select 0, %s7, %s5
  loop: start=0, step=1, limit=4
  $region2: #{model_builder_forward.5} parent=0 // loop_pre_header
    _
  $region3: #{model_builder_forward.5} parent=0 // loop_header
    %s10 = sphi 0, %s14
    %p11 = scmp.ge.s32.totalorder %s10, 4
    %s20 = sphi 0, %s22
    %s23 = sphi 0, %s20
    %s24 = sphi 0, %s23
    %s40 = sphi 0, %s24
    %s46 = sphi 0, %s48
    %s49 = sphi 0, %s46
    %s50 = sphi 0, %s49
    %s66 = sphi 0, %s50
    %s70 = sphi 0, %s70
    %s72 = sphi 0, %s70
    %s73 = sphi 0, %s72
    %s87 = sphi 0, %s73
    %s91 = sphi 0, %s91
    %s93 = sphi 0, %s91
    %s94 = sphi 0, %s93
    %s108 = sphi 0, %s94
    %s114 = sphi 0, %s116
    %s117 = sphi 0, %s114
    %s118 = sphi 0, %s117
    %s134 = sphi 0, %s118
  $region4: #{model_builder_forward.5} parent=0 // loop_header_branch
    %13 = sbr.rel (%p11) target = $region8
  $region5: #{model_builder_forward.5} parent=0 // loop_body
    %s15 = ssub.s32 %s10, 1
    %s16 = ssub.s32 %s10, 2
    %s17 = sadd.s32 %s10, 1
    %s18 = ssub.s32 %s10, %s17
    %p19 = scmp.eq.s32.totalorder %s18, 0
    %s21 = sadd.s32 %s20, 1
    %s22 = scalar_select %p19, %s20, %s21
    %p25 = pneg %p19
    %p26 = scmp.eq.s32.totalorder %s10, 1
    %p27 = por %p25, %p26
    %p28 = scmp.ne.s32.totalorder %s20, %s23
    %p29 = scmp.eq.s32.totalorder %s10, 0
    %p30 = por %p28, %p29
    %p31 = scmp.ne.s32.totalorder %s20, %s23
    %p32 = scmp.eq.s32.totalorder %s15, 1
    %p33 = por %p31, %p32
    %p34 = scmp.ne.s32.totalorder %s23, %s24
    %p35 = scmp.eq.s32.totalorder %s15, 0
    %p36 = por %p34, %p35
    %p37 = scmp.ne.s32.totalorder %s23, %s24
    %p38 = scmp.eq.s32.totalorder %s16, 1
    %p39 = por %p37, %p38
    %p41 = scmp.ne.s32.totalorder %s24, %s40
    %p42 = scmp.eq.s32.totalorder %s16, 0
    %p43 = por %p41, %p42
    %s44 = ssub.s32 %s10, %s17
    %p45 = scmp.eq.s32.totalorder %s44, 0
    %s47 = sadd.s32 %s46, 1
    %s48 = scalar_select %p45, %s46, %s47
    %p51 = pneg %p45
    %p52 = scmp.eq.s32.totalorder %s10, 1
    %p53 = por %p51, %p52
    %p54 = scmp.ne.s32.totalorder %s46, %s49
    %p55 = scmp.eq.s32.totalorder %s10, 0
    %p56 = por %p54, %p55
    %p57 = scmp.ne.s32.totalorder %s46, %s49
    %p58 = scmp.eq.s32.totalorder %s15, 1
    %p59 = por %p57, %p58
    %p60 = scmp.ne.s32.totalorder %s49, %s50
    %p61 = scmp.eq.s32.totalorder %s15, 0
    %p62 = por %p60, %p61
    %p63 = scmp.ne.s32.totalorder %s49, %s50
    %p64 = scmp.eq.s32.totalorder %s16, 1
    %p65 = por %p63, %p64
    %p67 = scmp.ne.s32.totalorder %s50, %s66
    %p68 = scmp.eq.s32.totalorder %s16, 0
    %p69 = por %p67, %p68
    %s71 = sadd.s32 %s70, 1
    %p74 = scmp.eq.s32.totalorder %s10, 1
    %p75 = scmp.ne.s32.totalorder %s70, %s72
    %p76 = scmp.eq.s32.totalorder %s10, 0
    %p77 = por %p75, %p76
    %p78 = scmp.ne.s32.totalorder %s70, %s72
    %p79 = scmp.eq.s32.totalorder %s15, 1
    %p80 = por %p78, %p79
    %p81 = scmp.ne.s32.totalorder %s72, %s73
    %p82 = scmp.eq.s32.totalorder %s15, 0
    %p83 = por %p81, %p82
    %p84 = scmp.ne.s32.totalorder %s72, %s73
    %p85 = scmp.eq.s32.totalorder %s16, 1
    %p86 = por %p84, %p85
    %p88 = scmp.ne.s32.totalorder %s73, %s87
    %p89 = scmp.eq.s32.totalorder %s16, 0
    %p90 = por %p88, %p89
    %s92 = sadd.s32 %s91, 1
    %p95 = scmp.eq.s32.totalorder %s10, 1
    %p96 = scmp.ne.s32.totalorder %s91, %s93
    %p97 = scmp.eq.s32.totalorder %s10, 0
    %p98 = por %p96, %p97
    %p99 = scmp.ne.s32.totalorder %s91, %s93
    %p100 = scmp.eq.s32.totalorder %s15, 1
    %p101 = por %p99, %p100
    %p102 = scmp.ne.s32.totalorder %s93, %s94
    %p103 = scmp.eq.s32.totalorder %s15, 0
    %p104 = por %p102, %p103
    %p105 = scmp.ne.s32.totalorder %s93, %s94
    %p106 = scmp.eq.s32.totalorder %s16, 1
    %p107 = por %p105, %p106
    %p109 = scmp.ne.s32.totalorder %s94, %s108
    %p110 = scmp.eq.s32.totalorder %s16, 0
    %p111 = por %p109, %p110
    %s112 = ssub.s32 %s10, %s17
    %p113 = scmp.eq.s32.totalorder %s112, 0
    %s115 = sadd.s32 %s114, 1
    %s116 = scalar_select %p113, %s114, %s115
    %p119 = pneg %p113
    %p120 = scmp.eq.s32.totalorder %s10, 1
    %p121 = por %p119, %p120
    %p122 = scmp.ne.s32.totalorder %s114, %s117
    %p123 = scmp.eq.s32.totalorder %s10, 0
    %p124 = por %p122, %p123
    %p125 = scmp.ne.s32.totalorder %s114, %s117
    %p126 = scmp.eq.s32.totalorder %s15, 1
    %p127 = por %p125, %p126
    %p128 = scmp.ne.s32.totalorder %s117, %s118
    %p129 = scmp.eq.s32.totalorder %s15, 0
    %p130 = por %p128, %p129
    %p131 = scmp.ne.s32.totalorder %s117, %s118
    %p132 = scmp.eq.s32.totalorder %s16, 1
    %p133 = por %p131, %p132
    %p135 = scmp.ne.s32.totalorder %s118, %s134
    %p136 = scmp.eq.s32.totalorder %s16, 0
    %p137 = por %p135, %p136
    %p138 = scmp.le.s32.totalorder 1, %s10
    %p139 = scmp.lt.s32.totalorder %s10, 3
    %p140 = pnand %p138, %p139
    %p141 = pneg %p140
    // Predicated region
    $region9: #{model_builder_forward.5} parent=5 // pred_check
      _
    $region10: #{model_builder_forward.5} parent=5 // pred_check_branch
      %143 = sbr.rel (%p140) target = $region12
    $region11: #{model_builder_forward.5} parent=5 // pred_region
      %s144 = ssub.s32 %s10, 1
      // Predicated region
      $region13: #{model_builder_forward.5} parent=11 // pred_check
        %p145 = pneg %p83
      $region14: #{model_builder_forward.5} parent=11 // pred_check_branch
        %147 = sbr.rel (%p145) target = $region16
      $region15: #{model_builder_forward.5} parent=11 // pred_region
        _
      $region16: #{model_builder_forward.5} parent=11 // pred_fallthru
        _
      // Predicated region
      $region17: #{model_builder_forward.5} parent=11 // pred_check
        %p148 = pneg %p104
      $region18: #{model_builder_forward.5} parent=11 // pred_check_branch
        %150 = sbr.rel (%p148) target = $region20
      $region19: #{model_builder_forward.5} parent=11 // pred_region
        _
      $region20: #{model_builder_forward.5} parent=11 // pred_fallthru
        _
    $region12: #{model_builder_forward.5} parent=5 // pred_fallthru
      _
    %p151 = scmp.lt.s32.totalorder %s10, 2
    // Predicated region
    $region21: #{model_builder_forward.5} parent=5 // pred_check
      %p152 = pneg %p151
    $region22: #{model_builder_forward.5} parent=5 // pred_check_branch
      %154 = sbr.rel (%p152) target = $region24
    $region23: #{model_builder_forward.5} parent=5 // pred_region
      // Predicated region
      $region25: #{model_builder_forward.5} parent=23 // pred_check
        %p155 = pneg %p30
      $region26: #{model_builder_forward.5} parent=23 // pred_check_branch
        %157 = sbr.rel (%p155) target = $region28
      $region27: #{model_builder_forward.5} parent=23 // pred_region
        %p158 = scmp.lt.s32.totalorder %s10, 1
        %s159 = scalar_select %p158, %s10, 1
        %s160 = smul.addr %s159, 4
        %s161 = smul.addr %s160, 4
        %s162 = scalar_lea.vmem %s0, %s161
      $region28: #{model_builder_forward.5} parent=23 // pred_fallthru
        _
      // Predicated region
      $region29: #{model_builder_forward.5} parent=23 // pred_check
        %p163 = pneg %p56
      $region30: #{model_builder_forward.5} parent=23 // pred_check_branch
        %165 = sbr.rel (%p163) target = $region32
      $region31: #{model_builder_forward.5} parent=23 // pred_region
        %p166 = scmp.lt.s32.totalorder %s10, 1
        %s167 = scalar_select %p166, %s10, 1
        %s168 = smul.addr %s167, 100
        %s169 = smul.addr %s168, 4
        %s170 = scalar_lea.vmem %s1, %s169
      $region32: #{model_builder_forward.5} parent=23 // pred_fallthru
        _
    $region24: #{model_builder_forward.5} parent=5 // pred_fallthru
      _
    %p171 = scmp.le.s32.totalorder 1, %s10
    %p172 = scmp.lt.s32.totalorder %s10, 3
    %p173 = pnand %p171, %p172
    %p174 = pneg %p173
    // Predicated region
    $region33: #{model_builder_forward.5} parent=5 // pred_check
      _
    $region34: #{model_builder_forward.5} parent=5 // pred_check_branch
      %176 = sbr.rel (%p173) target = $region36
    $region35: #{model_builder_forward.5} parent=5 // pred_region
      %s177 = ssub.s32 %s10, 1
      %p178 = scmp.lt.s32.totalorder %s15, 1
      %s179 = scalar_select %p178, %s15, 1
      %s180 = smul.addr %s179, 4
      %s181 = smul.addr %s180, 4
      %s182 = scalar_lea.vmem %s0, %s181
      %p183 = pneg %p36
      %p184 = pneg %p33
      %p185 = scmp.lt.s32.totalorder %s15, 1
      %s186 = scalar_select %p185, %s15, 1
      %s187 = smul.addr %s186, 100
      %s188 = smul.addr %s187, 4
      %s189 = scalar_lea.vmem %s1, %s188
      %p190 = pneg %p62
      %p191 = pneg %p59
      %p192 = pneg %p83
      %p193 = pneg %p80
      %p194 = pneg %p104
      %p195 = pneg %p101
      %p196 = pneg %p130
      %p197 = pneg %p127
      %p198 = scmp.lt.s32.totalorder %s15, 1
      %s199 = scalar_select %p198, %s15, 1
      %s200 = smul.addr %s199, 8
      %s201 = scalar_lea.vmem %s4, %s200
      %p202 = scmp.lt.s32.totalorder %s15, 1
      %s203 = scalar_select %p202, %s15, 1
      %s204 = smul.addr %s203, 4
      %s205 = smul.addr %s204, 4
      %s206 = scalar_lea.vmem %s0, %s205
      %p207 = scmp.lt.s32.totalorder %s15, 1
      %s208 = scalar_select %p207, %s15, 1
      %s209 = smul.addr %s208, 100
      %s210 = smul.addr %s209, 4
      %s211 = scalar_lea.vmem %s1, %s210
      %p212 = scmp.lt.s32.totalorder %s15, 1
      %s213 = scalar_select %p212, %s15, 1
      %s214 = smul.addr %s213, 8
      %s215 = scalar_lea.vmem %s4, %s214
      %v216 = vld [vmem:[%s206] sm:$0xf]
      %v217 = vld [vmem:[%s206 + $0x4] sm:$0xf]
      %v218 = vld [vmem:[%s206 + $0x8] sm:$0xf]
      %v219 = vld [vmem:[%s206 + $0xc] sm:$0xf]
      %v220 = vunpack.c.l.bf16 %v216
      %v221 = vunpack.c.l.bf16 %v217
      %v222 = vunpack.c.l.bf16 %v218
      %v223 = vunpack.c.l.bf16 %v219
      %v224 = vld [vmem:[%s211] sm:$0xf]
      %v225 = vld [vmem:[%s211 + $0x4] sm:$0xf]
      %v226 = vld [vmem:[%s211 + $0x8] sm:$0xf]
      %v227 = vld [vmem:[%s211 + $0xc] sm:$0xf]
      %v228 = vunpack.c.l.bf16 %v224
      %v229 = vunpack.c.l.bf16 %v225
      %v230 = vunpack.c.l.bf16 %v226
      %v231 = vunpack.c.l.bf16 %v227
      %233 = vset.pattern.permute.xlu0 0
      %234 = vperm.xlu0 %233, %v220
      %v235 = vpop.permute.xlu0 %234
      %238 = vset.pattern.permute.xlu0 0
      %239 = vperm.xlu0 %238, %v221
      %v240 = vpop.permute.xlu0 %239
      %243 = vset.pattern.permute.xlu0 0
      %244 = vperm.xlu0 %243, %v222
      %v245 = vpop.permute.xlu0 %244
      %248 = vset.pattern.permute.xlu0 0
      %249 = vperm.xlu0 %248, %v223
      %v250 = vpop.permute.xlu0 %249
      %v252 = vmul.f32 %v228, %v235
      %v253 = vmul.f32 %v229, %v240
      %v254 = vmul.f32 %v230, %v245
      %v255 = vmul.f32 %v231, %v250
      %s256 = scalar_lea.vmem %s211, 64
      %v257 = vld [vmem:[%s256] sm:$0xf]
      %v258 = vld [vmem:[%s256 + $0x4] sm:$0xf]
      %v259 = vld [vmem:[%s256 + $0x8] sm:$0xf]
      %v260 = vld [vmem:[%s256 + $0xc] sm:$0xf]
      %v261 = vunpack.c.l.bf16 %v257
      %v262 = vunpack.c.l.bf16 %v258
      %v263 = vunpack.c.l.bf16 %v259
      %v264 = vunpack.c.l.bf16 %v260
      %265 = vset.pattern.permute.xlu0 4
      %266 = vperm.xlu0 %265, %v220
      %v267 = vpop.permute.xlu0 %266
      %269 = vset.pattern.permute.xlu0 4
      %270 = vperm.xlu0 %269, %v221
      %v271 = vpop.permute.xlu0 %270
      %273 = vset.pattern.permute.xlu0 4
      %274 = vperm.xlu0 %273, %v222
      %v275 = vpop.permute.xlu0 %274
      %277 = vset.pattern.permute.xlu0 4
      %278 = vperm.xlu0 %277, %v223
      %v279 = vpop.permute.xlu0 %278
      %v281 = vmul.f32 %v261, %v267
      %v282 = vmul.f32 %v262, %v271
      %v283 = vmul.f32 %v263, %v275
      %v284 = vmul.f32 %v264, %v279
      %v285 = vadd.f32 %v252, %v281
      %v286 = vadd.f32 %v253, %v282
      %v287 = vadd.f32 %v254, %v283
      %v288 = vadd.f32 %v255, %v284
      %s289 = scalar_lea.vmem %s211, 128
      %v290 = vld [vmem:[%s289] sm:$0xf]
      %v291 = vld [vmem:[%s289 + $0x4] sm:$0xf]
      %v292 = vld [vmem:[%s289 + $0x8] sm:$0xf]
      %v293 = vld [vmem:[%s289 + $0xc] sm:$0xf]
      %v294 = vunpack.c.l.bf16 %v290
      %v295 = vunpack.c.l.bf16 %v291
      %v296 = vunpack.c.l.bf16 %v292
      %v297 = vunpack.c.l.bf16 %v293
      %298 = vset.pattern.permute.xlu0 8
      %299 = vperm.xlu0 %298, %v220
      %v300 = vpop.permute.xlu0 %299
      %302 = vset.pattern.permute.xlu0 8
      %303 = vperm.xlu0 %302, %v221
      %v304 = vpop.permute.xlu0 %303
      %306 = vset.pattern.permute.xlu0 8
      %307 = vperm.xlu0 %306, %v222
      %v308 = vpop.permute.xlu0 %307
      %310 = vset.pattern.permute.xlu0 8
      %311 = vperm.xlu0 %310, %v223
      %v312 = vpop.permute.xlu0 %311
      %v314 = vmul.f32 %v294, %v300
      %v315 = vmul.f32 %v295, %v304
      %v316 = vmul.f32 %v296, %v308
      %v317 = vmul.f32 %v297, %v312
      %v318 = vadd.f32 %v285, %v314
      %v319 = vadd.f32 %v286, %v315
      %v320 = vadd.f32 %v287, %v316
      %v321 = vadd.f32 %v288, %v317
      %s322 = scalar_lea.vmem %s211, 192
      %v323 = vld [vmem:[%s322] sm:$0xf]
      %v324 = vld [vmem:[%s322 + $0x4] sm:$0xf]
      %v325 = vld [vmem:[%s322 + $0x8] sm:$0xf]
      %v326 = vld [vmem:[%s322 + $0xc] sm:$0xf]
      %v327 = vunpack.c.l.bf16 %v323
      %v328 = vunpack.c.l.bf16 %v324
      %v329 = vunpack.c.l.bf16 %v325
      %v330 = vunpack.c.l.bf16 %v326
      %331 = vset.pattern.permute.xlu0 12
      %332 = vperm.xlu0 %331, %v220
      %v333 = vpop.permute.xlu0 %332
      %335 = vset.pattern.permute.xlu0 12
      %336 = vperm.xlu0 %335, %v221
      %v337 = vpop.permute.xlu0 %336
      %339 = vset.pattern.permute.xlu0 12
      %340 = vperm.xlu0 %339, %v222
      %v341 = vpop.permute.xlu0 %340
      %343 = vset.pattern.permute.xlu0 12
      %344 = vperm.xlu0 %343, %v223
      %v345 = vpop.permute.xlu0 %344
      %v347 = vmul.f32 %v327, %v333
      %v348 = vmul.f32 %v328, %v337
      %v349 = vmul.f32 %v329, %v341
      %v350 = vmul.f32 %v330, %v345
      %v351 = vadd.f32 %v318, %v347
      %v352 = vadd.f32 %v319, %v348
      %v353 = vadd.f32 %v320, %v349
      %v354 = vadd.f32 %v321, %v350
      %s355 = scalar_lea.vmem %s211, 256
      %v356 = vld [vmem:[%s355] sm:$0xf]
      %v357 = vld [vmem:[%s355 + $0x4] sm:$0xf]
      %v358 = vld [vmem:[%s355 + $0x8] sm:$0xf]
      %v359 = vld [vmem:[%s355 + $0xc] sm:$0xf]
      %v360 = vunpack.c.l.bf16 %v356
      %v361 = vunpack.c.l.bf16 %v357
      %v362 = vunpack.c.l.bf16 %v358
      %v363 = vunpack.c.l.bf16 %v359
      %364 = vset.pattern.permute.xlu0 16
      %365 = vperm.xlu0 %364, %v220
      %v366 = vpop.permute.xlu0 %365
      %368 = vset.pattern.permute.xlu0 16
      %369 = vperm.xlu0 %368, %v221
      %v370 = vpop.permute.xlu0 %369
      %372 = vset.pattern.permute.xlu0 16
      %373 = vperm.xlu0 %372, %v222
      %v374 = vpop.permute.xlu0 %373
      %376 = vset.pattern.permute.xlu0 16
      %377 = vperm.xlu0 %376, %v223
      %v378 = vpop.permute.xlu0 %377
      %v380 = vmul.f32 %v360, %v366
      %v381 = vmul.f32 %v361, %v370
      %v382 = vmul.f32 %v362, %v374
      %v383 = vmul.f32 %v363, %v378
      %v384 = vadd.f32 %v351, %v380
      %v385 = vadd.f32 %v352, %v381
      %v386 = vadd.f32 %v353, %v382
      %v387 = vadd.f32 %v354, %v383
      %s388 = scalar_lea.vmem %s211, 320
      %v389 = vld [vmem:[%s388] sm:$0xf]
      %v390 = vld [vmem:[%s388 + $0x4] sm:$0xf]
      %v391 = vld [vmem:[%s388 + $0x8] sm:$0xf]
      %v392 = vld [vmem:[%s388 + $0xc] sm:$0xf]
      %v393 = vunpack.c.l.bf16 %v389
      %v394 = vunpack.c.l.bf16 %v390
      %v395 = vunpack.c.l.bf16 %v391
      %v396 = vunpack.c.l.bf16 %v392
      %397 = vset.pattern.permute.xlu0 20
      %398 = vperm.xlu0 %397, %v220
      %v399 = vpop.permute.xlu0 %398
      %401 = vset.pattern.permute.xlu0 20
      %402 = vperm.xlu0 %401, %v221
      %v403 = vpop.permute.xlu0 %402
      %405 = vset.pattern.permute.xlu0 20
      %406 = vperm.xlu0 %405, %v222
      %v407 = vpop.permute.xlu0 %406
      %409 = vset.pattern.permute.xlu0 20
      %410 = vperm.xlu0 %409, %v223
      %v411 = vpop.permute.xlu0 %410
      %v413 = vmul.f32 %v393, %v399
      %v414 = vmul.f32 %v394, %v403
      %v415 = vmul.f32 %v395, %v407
      %v416 = vmul.f32 %v396, %v411
      %v417 = vadd.f32 %v384, %v413
      %v418 = vadd.f32 %v385, %v414
      %v419 = vadd.f32 %v386, %v415
      %v420 = vadd.f32 %v387, %v416
      %s421 = scalar_lea.vmem %s211, 384
      %v422 = vld [vmem:[%s421] sm:$0xf]
      %v423 = vld [vmem:[%s421 + $0x4] sm:$0xf]
      %v424 = vld [vmem:[%s421 + $0x8] sm:$0xf]
      %v425 = vld [vmem:[%s421 + $0xc] sm:$0xf]
      %v426 = vunpack.c.l.bf16 %v422
      %v427 = vunpack.c.l.bf16 %v423
      %v428 = vunpack.c.l.bf16 %v424
      %v429 = vunpack.c.l.bf16 %v425
      %430 = vset.pattern.permute.xlu0 24
      %431 = vperm.xlu0 %430, %v220
      %v432 = vpop.permute.xlu0 %431
      %434 = vset.pattern.permute.xlu0 24
      %435 = vperm.xlu0 %434, %v221
      %v436 = vpop.permute.xlu0 %435
      %438 = vset.pattern.permute.xlu0 24
      %439 = vperm.xlu0 %438, %v222
      %v440 = vpop.permute.xlu0 %439
      %442 = vset.pattern.permute.xlu0 24
      %443 = vperm.xlu0 %442, %v223
      %v444 = vpop.permute.xlu0 %443
      %v446 = vmul.f32 %v426, %v432
      %v447 = vmul.f32 %v427, %v436
      %v448 = vmul.f32 %v428, %v440
      %v449 = vmul.f32 %v429, %v444
      %v450 = vadd.f32 %v417, %v446
      %v451 = vadd.f32 %v418, %v447
      %v452 = vadd.f32 %v419, %v448
      %v453 = vadd.f32 %v420, %v449
      %s454 = scalar_lea.vmem %s211, 16
      %v455 = vld [vmem:[%s454] sm:$0xf]
      %v456 = vld [vmem:[%s454 + $0x4] sm:$0xf]
      %v457 = vld [vmem:[%s454 + $0x8] sm:$0xf]
      %v458 = vld [vmem:[%s454 + $0xc] sm:$0xf]
      %v459 = vunpack.c.l.bf16 %v455
      %v460 = vunpack.c.l.bf16 %v456
      %v461 = vunpack.c.l.bf16 %v457
      %v462 = vunpack.c.l.bf16 %v458
      %463 = vset.pattern.permute.xlu0 1
      %464 = vperm.xlu0 %463, %v220
      %v465 = vpop.permute.xlu0 %464
      %467 = vset.pattern.permute.xlu0 1
      %468 = vperm.xlu0 %467, %v221
      %v469 = vpop.permute.xlu0 %468
      %471 = vset.pattern.permute.xlu0 1
      %472 = vperm.xlu0 %471, %v222
      %v473 = vpop.permute.xlu0 %472
      %475 = vset.pattern.permute.xlu0 1
      %476 = vperm.xlu0 %475, %v223
      %v477 = vpop.permute.xlu0 %476
      %v479 = vmul.f32 %v459, %v465
      %v480 = vmul.f32 %v460, %v469
      %v481 = vmul.f32 %v461, %v473
      %v482 = vmul.f32 %v462, %v477
      %s483 = scalar_lea.vmem %s211, 80
      %v484 = vld [vmem:[%s483] sm:$0xf]
      %v485 = vld [vmem:[%s483 + $0x4] sm:$0xf]
      %v486 = vld [vmem:[%s483 + $0x8] sm:$0xf]
      %v487 = vld [vmem:[%s483 + $0xc] sm:$0xf]
      %v488 = vunpack.c.l.bf16 %v484
      %v489 = vunpack.c.l.bf16 %v485
      %v490 = vunpack.c.l.bf16 %v486
      %v491 = vunpack.c.l.bf16 %v487
      %492 = vset.pattern.permute.xlu0 5
      %493 = vperm.xlu0 %492, %v220
      %v494 = vpop.permute.xlu0 %493
      %496 = vset.pattern.permute.xlu0 5
      %497 = vperm.xlu0 %496, %v221
      %v498 = vpop.permute.xlu0 %497
      %500 = vset.pattern.permute.xlu0 5
      %501 = vperm.xlu0 %500, %v222
      %v502 = vpop.permute.xlu0 %501
      %504 = vset.pattern.permute.xlu0 5
      %505 = vperm.xlu0 %504, %v223
      %v506 = vpop.permute.xlu0 %505
      %v508 = vmul.f32 %v488, %v494
      %v509 = vmul.f32 %v489, %v498
      %v510 = vmul.f32 %v490, %v502
      %v511 = vmul.f32 %v491, %v506
      %v512 = vadd.f32 %v479, %v508
      %v513 = vadd.f32 %v480, %v509
      %v514 = vadd.f32 %v481, %v510
      %v515 = vadd.f32 %v482, %v511
      %s516 = scalar_lea.vmem %s211, 144
      %v517 = vld [vmem:[%s516] sm:$0xf]
      %v518 = vld [vmem:[%s516 + $0x4] sm:$0xf]
      %v519 = vld [vmem:[%s516 + $0x8] sm:$0xf]
      %v520 = vld [vmem:[%s516 + $0xc] sm:$0xf]
      %v521 = vunpack.c.l.bf16 %v517
      %v522 = vunpack.c.l.bf16 %v518
      %v523 = vunpack.c.l.bf16 %v519
      %v524 = vunpack.c.l.bf16 %v520
      %525 = vset.pattern.permute.xlu0 9
      %526 = vperm.xlu0 %525, %v220
      %v527 = vpop.permute.xlu0 %526
      %529 = vset.pattern.permute.xlu0 9
      %530 = vperm.xlu0 %529, %v221
      %v531 = vpop.permute.xlu0 %530
      %533 = vset.pattern.permute.xlu0 9
      %534 = vperm.xlu0 %533, %v222
      %v535 = vpop.permute.xlu0 %534
      %537 = vset.pattern.permute.xlu0 9
      %538 = vperm.xlu0 %537, %v223
      %v539 = vpop.permute.xlu0 %538
      %v541 = vmul.f32 %v521, %v527
      %v542 = vmul.f32 %v522, %v531
      %v543 = vmul.f32 %v523, %v535
      %v544 = vmul.f32 %v524, %v539
      %v545 = vadd.f32 %v512, %v541
      %v546 = vadd.f32 %v513, %v542
      %v547 = vadd.f32 %v514, %v543
      %v548 = vadd.f32 %v515, %v544
      %s549 = scalar_lea.vmem %s211, 208
      %v550 = vld [vmem:[%s549] sm:$0xf]
      %v551 = vld [vmem:[%s549 + $0x4] sm:$0xf]
      %v552 = vld [vmem:[%s549 + $0x8] sm:$0xf]
      %v553 = vld [vmem:[%s549 + $0xc] sm:$0xf]
      %v554 = vunpack.c.l.bf16 %v550
      %v555 = vunpack.c.l.bf16 %v551
      %v556 = vunpack.c.l.bf16 %v552
      %v557 = vunpack.c.l.bf16 %v553
      %558 = vset.pattern.permute.xlu0 13
      %559 = vperm.xlu0 %558, %v220
      %v560 = vpop.permute.xlu0 %559
      %562 = vset.pattern.permute.xlu0 13
      %563 = vperm.xlu0 %562, %v221
      %v564 = vpop.permute.xlu0 %563
      %566 = vset.pattern.permute.xlu0 13
      %567 = vperm.xlu0 %566, %v222
      %v568 = vpop.permute.xlu0 %567
      %570 = vset.pattern.permute.xlu0 13
      %571 = vperm.xlu0 %570, %v223
      %v572 = vpop.permute.xlu0 %571
      %v574 = vmul.f32 %v554, %v560
      %v575 = vmul.f32 %v555, %v564
      %v576 = vmul.f32 %v556, %v568
      %v577 = vmul.f32 %v557, %v572
      %v578 = vadd.f32 %v545, %v574
      %v579 = vadd.f32 %v546, %v575
      %v580 = vadd.f32 %v547, %v576
      %v581 = vadd.f32 %v548, %v577
      %s582 = scalar_lea.vmem %s211, 272
      %v583 = vld [vmem:[%s582] sm:$0xf]
      %v584 = vld [vmem:[%s582 + $0x4] sm:$0xf]
      %v585 = vld [vmem:[%s582 + $0x8] sm:$0xf]
      %v586 = vld [vmem:[%s582 + $0xc] sm:$0xf]
      %v587 = vunpack.c.l.bf16 %v583
      %v588 = vunpack.c.l.bf16 %v584
      %v589 = vunpack.c.l.bf16 %v585
      %v590 = vunpack.c.l.bf16 %v586
      %591 = vset.pattern.permute.xlu0 17
      %592 = vperm.xlu0 %591, %v220
      %v593 = vpop.permute.xlu0 %592
      %595 = vset.pattern.permute.xlu0 17
      %596 = vperm.xlu0 %595, %v221
      %v597 = vpop.permute.xlu0 %596
      %599 = vset.pattern.permute.xlu0 17
      %600 = vperm.xlu0 %599, %v222
      %v601 = vpop.permute.xlu0 %600
      %603 = vset.pattern.permute.xlu0 17
      %604 = vperm.xlu0 %603, %v223
      %v605 = vpop.permute.xlu0 %604
      %v607 = vmul.f32 %v587, %v593
      %v608 = vmul.f32 %v588, %v597
      %v609 = vmul.f32 %v589, %v601
      %v610 = vmul.f32 %v590, %v605
      %v611 = vadd.f32 %v578, %v607
      %v612 = vadd.f32 %v579, %v608
      %v613 = vadd.f32 %v580, %v609
      %v614 = vadd.f32 %v581, %v610
      %s615 = scalar_lea.vmem %s211, 336
      %v616 = vld [vmem:[%s615] sm:$0xf]
      %v617 = vld [vmem:[%s615 + $0x4] sm:$0xf]
      %v618 = vld [vmem:[%s615 + $0x8] sm:$0xf]
      %v619 = vld [vmem:[%s615 + $0xc] sm:$0xf]
      %v620 = vunpack.c.l.bf16 %v616
      %v621 = vunpack.c.l.bf16 %v617
      %v622 = vunpack.c.l.bf16 %v618
      %v623 = vunpack.c.l.bf16 %v619
      %624 = vset.pattern.permute.xlu0 21
      %625 = vperm.xlu0 %624, %v220
      %v626 = vpop.permute.xlu0 %625
      %628 = vset.pattern.permute.xlu0 21
      %629 = vperm.xlu0 %628, %v221
      %v630 = vpop.permute.xlu0 %629
      %632 = vset.pattern.permute.xlu0 21
      %633 = vperm.xlu0 %632, %v222
      %v634 = vpop.permute.xlu0 %633
      %636 = vset.pattern.permute.xlu0 21
      %637 = vperm.xlu0 %636, %v223
      %v638 = vpop.permute.xlu0 %637
      %v640 = vmul.f32 %v620, %v626
      %v641 = vmul.f32 %v621, %v630
      %v642 = vmul.f32 %v622, %v634
      %v643 = vmul.f32 %v623, %v638
      %v644 = vadd.f32 %v611, %v640
      %v645 = vadd.f32 %v612, %v641
      %v646 = vadd.f32 %v613, %v642
      %v647 = vadd.f32 %v614, %v643
      %s648 = scalar_lea.vmem %s211, 32
      %v649 = vld [vmem:[%s648] sm:$0xf]
      %v650 = vld [vmem:[%s648 + $0x4] sm:$0xf]
      %v651 = vld [vmem:[%s648 + $0x8] sm:$0xf]
      %v652 = vld [vmem:[%s648 + $0xc] sm:$0xf]
      %v653 = vunpack.c.l.bf16 %v649
      %v654 = vunpack.c.l.bf16 %v650
      %v655 = vunpack.c.l.bf16 %v651
      %v656 = vunpack.c.l.bf16 %v652
      %657 = vset.pattern.permute.xlu0 2
      %658 = vperm.xlu0 %657, %v220
      %v659 = vpop.permute.xlu0 %658
      %661 = vset.pattern.permute.xlu0 2
      %662 = vperm.xlu0 %661, %v221
      %v663 = vpop.permute.xlu0 %662
      %665 = vset.pattern.permute.xlu0 2
      %666 = vperm.xlu0 %665, %v222
      %v667 = vpop.permute.xlu0 %666
      %669 = vset.pattern.permute.xlu0 2
      %670 = vperm.xlu0 %669, %v223
      %v671 = vpop.permute.xlu0 %670
      %v673 = vmul.f32 %v653, %v659
      %v674 = vmul.f32 %v654, %v663
      %v675 = vmul.f32 %v655, %v667
      %v676 = vmul.f32 %v656, %v671
      %s677 = scalar_lea.vmem %s211, 96
      %v678 = vld [vmem:[%s677] sm:$0xf]
      %v679 = vld [vmem:[%s677 + $0x4] sm:$0xf]
      %v680 = vld [vmem:[%s677 + $0x8] sm:$0xf]
      %v681 = vld [vmem:[%s677 + $0xc] sm:$0xf]
      %v682 = vunpack.c.l.bf16 %v678
      %v683 = vunpack.c.l.bf16 %v679
      %v684 = vunpack.c.l.bf16 %v680
      %v685 = vunpack.c.l.bf16 %v681
      %686 = vset.pattern.permute.xlu0 6
      %687 = vperm.xlu0 %686, %v220
      %v688 = vpop.permute.xlu0 %687
      %690 = vset.pattern.permute.xlu0 6
      %691 = vperm.xlu0 %690, %v221
      %v692 = vpop.permute.xlu0 %691
      %694 = vset.pattern.permute.xlu0 6
      %695 = vperm.xlu0 %694, %v222
      %v696 = vpop.permute.xlu0 %695
      %698 = vset.pattern.permute.xlu0 6
      %699 = vperm.xlu0 %698, %v223
      %v700 = vpop.permute.xlu0 %699
      %v702 = vmul.f32 %v682, %v688
      %v703 = vmul.f32 %v683, %v692
      %v704 = vmul.f32 %v684, %v696
      %v705 = vmul.f32 %v685, %v700
      %v706 = vadd.f32 %v673, %v702
      %v707 = vadd.f32 %v674, %v703
      %v708 = vadd.f32 %v675, %v704
      %v709 = vadd.f32 %v676, %v705
      %s710 = scalar_lea.vmem %s211, 160
      %v711 = vld [vmem:[%s710] sm:$0xf]
      %v712 = vld [vmem:[%s710 + $0x4] sm:$0xf]
      %v713 = vld [vmem:[%s710 + $0x8] sm:$0xf]
      %v714 = vld [vmem:[%s710 + $0xc] sm:$0xf]
      %v715 = vunpack.c.l.bf16 %v711
      %v716 = vunpack.c.l.bf16 %v712
      %v717 = vunpack.c.l.bf16 %v713
      %v718 = vunpack.c.l.bf16 %v714
      %719 = vset.pattern.permute.xlu0 10
      %720 = vperm.xlu0 %719, %v220
      %v721 = vpop.permute.xlu0 %720
      %723 = vset.pattern.permute.xlu0 10
      %724 = vperm.xlu0 %723, %v221
      %v725 = vpop.permute.xlu0 %724
      %727 = vset.pattern.permute.xlu0 10
      %728 = vperm.xlu0 %727, %v222
      %v729 = vpop.permute.xlu0 %728
      %731 = vset.pattern.permute.xlu0 10
      %732 = vperm.xlu0 %731, %v223
      %v733 = vpop.permute.xlu0 %732
      %v735 = vmul.f32 %v715, %v721
      %v736 = vmul.f32 %v716, %v725
      %v737 = vmul.f32 %v717, %v729
      %v738 = vmul.f32 %v718, %v733
      %v739 = vadd.f32 %v706, %v735
      %v740 = vadd.f32 %v707, %v736
      %v741 = vadd.f32 %v708, %v737
      %v742 = vadd.f32 %v709, %v738
      %s743 = scalar_lea.vmem %s211, 224
      %v744 = vld [vmem:[%s743] sm:$0xf]
      %v745 = vld [vmem:[%s743 + $0x4] sm:$0xf]
      %v746 = vld [vmem:[%s743 + $0x8] sm:$0xf]
      %v747 = vld [vmem:[%s743 + $0xc] sm:$0xf]
      %v748 = vunpack.c.l.bf16 %v744
      %v749 = vunpack.c.l.bf16 %v745
      %v750 = vunpack.c.l.bf16 %v746
      %v751 = vunpack.c.l.bf16 %v747
      %752 = vset.pattern.permute.xlu0 14
      %753 = vperm.xlu0 %752, %v220
      %v754 = vpop.permute.xlu0 %753
      %756 = vset.pattern.permute.xlu0 14
      %757 = vperm.xlu0 %756, %v221
      %v758 = vpop.permute.xlu0 %757
      %760 = vset.pattern.permute.xlu0 14
      %761 = vperm.xlu0 %760, %v222
      %v762 = vpop.permute.xlu0 %761
      %764 = vset.pattern.permute.xlu0 14
      %765 = vperm.xlu0 %764, %v223
      %v766 = vpop.permute.xlu0 %765
      %v768 = vmul.f32 %v748, %v754
      %v769 = vmul.f32 %v749, %v758
      %v770 = vmul.f32 %v750, %v762
      %v771 = vmul.f32 %v751, %v766
      %v772 = vadd.f32 %v739, %v768
      %v773 = vadd.f32 %v740, %v769
      %v774 = vadd.f32 %v741, %v770
      %v775 = vadd.f32 %v742, %v771
      %s776 = scalar_lea.vmem %s211, 288
      %v777 = vld [vmem:[%s776] sm:$0xf]
      %v778 = vld [vmem:[%s776 + $0x4] sm:$0xf]
      %v779 = vld [vmem:[%s776 + $0x8] sm:$0xf]
      %v780 = vld [vmem:[%s776 + $0xc] sm:$0xf]
      %v781 = vunpack.c.l.bf16 %v777
      %v782 = vunpack.c.l.bf16 %v778
      %v783 = vunpack.c.l.bf16 %v779
      %v784 = vunpack.c.l.bf16 %v780
      %785 = vset.pattern.permute.xlu0 18
      %786 = vperm.xlu0 %785, %v220
      %v787 = vpop.permute.xlu0 %786
      %789 = vset.pattern.permute.xlu0 18
      %790 = vperm.xlu0 %789, %v221
      %v791 = vpop.permute.xlu0 %790
      %793 = vset.pattern.permute.xlu0 18
      %794 = vperm.xlu0 %793, %v222
      %v795 = vpop.permute.xlu0 %794
      %797 = vset.pattern.permute.xlu0 18
      %798 = vperm.xlu0 %797, %v223
      %v799 = vpop.permute.xlu0 %798
      %v801 = vmul.f32 %v781, %v787
      %v802 = vmul.f32 %v782, %v791
      %v803 = vmul.f32 %v783, %v795
      %v804 = vmul.f32 %v784, %v799
      %v805 = vadd.f32 %v772, %v801
      %v806 = vadd.f32 %v773, %v802
      %v807 = vadd.f32 %v774, %v803
      %v808 = vadd.f32 %v775, %v804
      %s809 = scalar_lea.vmem %s211, 352
      %v810 = vld [vmem:[%s809] sm:$0xf]
      %v811 = vld [vmem:[%s809 + $0x4] sm:$0xf]
      %v812 = vld [vmem:[%s809 + $0x8] sm:$0xf]
      %v813 = vld [vmem:[%s809 + $0xc] sm:$0xf]
      %v814 = vunpack.c.l.bf16 %v810
      %v815 = vunpack.c.l.bf16 %v811
      %v816 = vunpack.c.l.bf16 %v812
      %v817 = vunpack.c.l.bf16 %v813
      %818 = vset.pattern.permute.xlu0 22
      %819 = vperm.xlu0 %818, %v220
      %v820 = vpop.permute.xlu0 %819
      %822 = vset.pattern.permute.xlu0 22
      %823 = vperm.xlu0 %822, %v221
      %v824 = vpop.permute.xlu0 %823
      %826 = vset.pattern.permute.xlu0 22
      %827 = vperm.xlu0 %826, %v222
      %v828 = vpop.permute.xlu0 %827
      %830 = vset.pattern.permute.xlu0 22
      %831 = vperm.xlu0 %830, %v223
      %v832 = vpop.permute.xlu0 %831
      %v834 = vmul.f32 %v814, %v820
      %v835 = vmul.f32 %v815, %v824
      %v836 = vmul.f32 %v816, %v828
      %v837 = vmul.f32 %v817, %v832
      %v838 = vadd.f32 %v805, %v834
      %v839 = vadd.f32 %v806, %v835
      %v840 = vadd.f32 %v807, %v836
      %v841 = vadd.f32 %v808, %v837
      %s842 = scalar_lea.vmem %s211, 48
      %v843 = vld [vmem:[%s842] sm:$0xf]
      %v844 = vld [vmem:[%s842 + $0x4] sm:$0xf]
      %v845 = vld [vmem:[%s842 + $0x8] sm:$0xf]
      %v846 = vld [vmem:[%s842 + $0xc] sm:$0xf]
      %v847 = vunpack.c.l.bf16 %v843
      %v848 = vunpack.c.l.bf16 %v844
      %v849 = vunpack.c.l.bf16 %v845
      %v850 = vunpack.c.l.bf16 %v846
      %851 = vset.pattern.permute.xlu0 3
      %852 = vperm.xlu0 %851, %v220
      %v853 = vpop.permute.xlu0 %852
      %855 = vset.pattern.permute.xlu0 3
      %856 = vperm.xlu0 %855, %v221
      %v857 = vpop.permute.xlu0 %856
      %859 = vset.pattern.permute.xlu0 3
      %860 = vperm.xlu0 %859, %v222
      %v861 = vpop.permute.xlu0 %860
      %863 = vset.pattern.permute.xlu0 3
      %864 = vperm.xlu0 %863, %v223
      %v865 = vpop.permute.xlu0 %864
      %v867 = vmul.f32 %v847, %v853
      %v868 = vmul.f32 %v848, %v857
      %v869 = vmul.f32 %v849, %v861
      %v870 = vmul.f32 %v850, %v865
      %s871 = scalar_lea.vmem %s211, 112
      %v872 = vld [vmem:[%s871] sm:$0xf]
      %v873 = vld [vmem:[%s871 + $0x4] sm:$0xf]
      %v874 = vld [vmem:[%s871 + $0x8] sm:$0xf]
      %v875 = vld [vmem:[%s871 + $0xc] sm:$0xf]
      %v876 = vunpack.c.l.bf16 %v872
      %v877 = vunpack.c.l.bf16 %v873
      %v878 = vunpack.c.l.bf16 %v874
      %v879 = vunpack.c.l.bf16 %v875
      %880 = vset.pattern.permute.xlu0 7
      %881 = vperm.xlu0 %880, %v220
      %v882 = vpop.permute.xlu0 %881
      %884 = vset.pattern.permute.xlu0 7
      %885 = vperm.xlu0 %884, %v221
      %v886 = vpop.permute.xlu0 %885
      %888 = vset.pattern.permute.xlu0 7
      %889 = vperm.xlu0 %888, %v222
      %v890 = vpop.permute.xlu0 %889
      %892 = vset.pattern.permute.xlu0 7
      %893 = vperm.xlu0 %892, %v223
      %v894 = vpop.permute.xlu0 %893
      %v896 = vmul.f32 %v876, %v882
      %v897 = vmul.f32 %v877, %v886
      %v898 = vmul.f32 %v878, %v890
      %v899 = vmul.f32 %v879, %v894
      %v900 = vadd.f32 %v867, %v896
      %v901 = vadd.f32 %v868, %v897
      %v902 = vadd.f32 %v869, %v898
      %v903 = vadd.f32 %v870, %v899
      %s904 = scalar_lea.vmem %s211, 176
      %v905 = vld [vmem:[%s904] sm:$0xf]
      %v906 = vld [vmem:[%s904 + $0x4] sm:$0xf]
      %v907 = vld [vmem:[%s904 + $0x8] sm:$0xf]
      %v908 = vld [vmem:[%s904 + $0xc] sm:$0xf]
      %v909 = vunpack.c.l.bf16 %v905
      %v910 = vunpack.c.l.bf16 %v906
      %v911 = vunpack.c.l.bf16 %v907
      %v912 = vunpack.c.l.bf16 %v908
      %913 = vset.pattern.permute.xlu0 11
      %914 = vperm.xlu0 %913, %v220
      %v915 = vpop.permute.xlu0 %914
      %917 = vset.pattern.permute.xlu0 11
      %918 = vperm.xlu0 %917, %v221
      %v919 = vpop.permute.xlu0 %918
      %921 = vset.pattern.permute.xlu0 11
      %922 = vperm.xlu0 %921, %v222
      %v923 = vpop.permute.xlu0 %922
      %925 = vset.pattern.permute.xlu0 11
      %926 = vperm.xlu0 %925, %v223
      %v927 = vpop.permute.xlu0 %926
      %v929 = vmul.f32 %v909, %v915
      %v930 = vmul.f32 %v910, %v919
      %v931 = vmul.f32 %v911, %v923
      %v932 = vmul.f32 %v912, %v927
      %v933 = vadd.f32 %v900, %v929
      %v934 = vadd.f32 %v901, %v930
      %v935 = vadd.f32 %v902, %v931
      %v936 = vadd.f32 %v903, %v932
      %s937 = scalar_lea.vmem %s211, 240
      %v938 = vld [vmem:[%s937] sm:$0xf]
      %v939 = vld [vmem:[%s937 + $0x4] sm:$0xf]
      %v940 = vld [vmem:[%s937 + $0x8] sm:$0xf]
      %v941 = vld [vmem:[%s937 + $0xc] sm:$0xf]
      %v942 = vunpack.c.l.bf16 %v938
      %v943 = vunpack.c.l.bf16 %v939
      %v944 = vunpack.c.l.bf16 %v940
      %v945 = vunpack.c.l.bf16 %v941
      %946 = vset.pattern.permute.xlu0 15
      %947 = vperm.xlu0 %946, %v220
      %v948 = vpop.permute.xlu0 %947
      %950 = vset.pattern.permute.xlu0 15
      %951 = vperm.xlu0 %950, %v221
      %v952 = vpop.permute.xlu0 %951
      %954 = vset.pattern.permute.xlu0 15
      %955 = vperm.xlu0 %954, %v222
      %v956 = vpop.permute.xlu0 %955
      %958 = vset.pattern.permute.xlu0 15
      %959 = vperm.xlu0 %958, %v223
      %v960 = vpop.permute.xlu0 %959
      %v962 = vmul.f32 %v942, %v948
      %v963 = vmul.f32 %v943, %v952
      %v964 = vmul.f32 %v944, %v956
      %v965 = vmul.f32 %v945, %v960
      %v966 = vadd.f32 %v933, %v962
      %v967 = vadd.f32 %v934, %v963
      %v968 = vadd.f32 %v935, %v964
      %v969 = vadd.f32 %v936, %v965
      %s970 = scalar_lea.vmem %s211, 304
      %v971 = vld [vmem:[%s970] sm:$0xf]
      %v972 = vld [vmem:[%s970 + $0x4] sm:$0xf]
      %v973 = vld [vmem:[%s970 + $0x8] sm:$0xf]
      %v974 = vld [vmem:[%s970 + $0xc] sm:$0xf]
      %v975 = vunpack.c.l.bf16 %v971
      %v976 = vunpack.c.l.bf16 %v972
      %v977 = vunpack.c.l.bf16 %v973
      %v978 = vunpack.c.l.bf16 %v974
      %979 = vset.pattern.permute.xlu0 19
      %980 = vperm.xlu0 %979, %v220
      %v981 = vpop.permute.xlu0 %980
      %983 = vset.pattern.permute.xlu0 19
      %984 = vperm.xlu0 %983, %v221
      %v985 = vpop.permute.xlu0 %984
      %987 = vset.pattern.permute.xlu0 19
      %988 = vperm.xlu0 %987, %v222
      %v989 = vpop.permute.xlu0 %988
      %991 = vset.pattern.permute.xlu0 19
      %992 = vperm.xlu0 %991, %v223
      %v993 = vpop.permute.xlu0 %992
      %v995 = vmul.f32 %v975, %v981
      %v996 = vmul.f32 %v976, %v985
      %v997 = vmul.f32 %v977, %v989
      %v998 = vmul.f32 %v978, %v993
      %v999 = vadd.f32 %v966, %v995
      %v1000 = vadd.f32 %v967, %v996
      %v1001 = vadd.f32 %v968, %v997
      %v1002 = vadd.f32 %v969, %v998
      %s1003 = scalar_lea.vmem %s211, 368
      %v1004 = vld [vmem:[%s1003] sm:$0xf]
      %v1005 = vld [vmem:[%s1003 + $0x4] sm:$0xf]
      %v1006 = vld [vmem:[%s1003 + $0x8] sm:$0xf]
      %v1007 = vld [vmem:[%s1003 + $0xc] sm:$0xf]
      %v1008 = vunpack.c.l.bf16 %v1004
      %v1009 = vunpack.c.l.bf16 %v1005
      %v1010 = vunpack.c.l.bf16 %v1006
      %v1011 = vunpack.c.l.bf16 %v1007
      %1012 = vset.pattern.permute.xlu0 23
      %1013 = vperm.xlu0 %1012, %v220
      %v1014 = vpop.permute.xlu0 %1013
      %1016 = vset.pattern.permute.xlu0 23
      %1017 = vperm.xlu0 %1016, %v221
      %v1018 = vpop.permute.xlu0 %1017
      %1020 = vset.pattern.permute.xlu0 23
      %1021 = vperm.xlu0 %1020, %v222
      %v1022 = vpop.permute.xlu0 %1021
      %1024 = vset.pattern.permute.xlu0 23
      %1025 = vperm.xlu0 %1024, %v223
      %v1026 = vpop.permute.xlu0 %1025
      %v1028 = vmul.f32 %v1008, %v1014
      %v1029 = vmul.f32 %v1009, %v1018
      %v1030 = vmul.f32 %v1010, %v1022
      %v1031 = vmul.f32 %v1011, %v1026
      %v1032 = vadd.f32 %v999, %v1028
      %v1033 = vadd.f32 %v1000, %v1029
      %v1034 = vadd.f32 %v1001, %v1030
      %v1035 = vadd.f32 %v1002, %v1031
      %v1036 = vadd.f32 %v450, %v644
      %v1037 = vadd.f32 %v451, %v645
      %v1038 = vadd.f32 %v452, %v646
      %v1039 = vadd.f32 %v453, %v647
      %v1040 = vadd.f32 %v1036, %v838
      %v1041 = vadd.f32 %v1037, %v839
      %v1042 = vadd.f32 %v1038, %v840
      %v1043 = vadd.f32 %v1039, %v841
      %v1044 = vadd.f32 %v1040, %v1032
      %v1045 = vadd.f32 %v1041, %v1033
      %v1046 = vadd.f32 %v1042, %v1034
      %v1047 = vadd.f32 %v1043, %v1035
      %v1048 = vld [vmem:[%s2] sm:$0xff]
      %v1049 = vld [vmem:[%s3] sm:$0xff]
      %1051 = vset.pattern.permute.xlu0 0
      %1052 = vperm.xlu0 %1051, %v1049
      %v1053 = vpop.permute.xlu0 %1052
      %vm1055 = vcmask 261120
      %v1057 = vsel %vm1055, %v1048, 0
      %1059 = vmatprep.subr.mxu0 0.0
      %1060 = vmatpush1.msra.mxu0 %v1044
      %1061 = vmatprep.subr.mxu0 0.0
      %1062 = vmatpush1.msra.mxu0 %v1045
      %1063 = vmatprep.subr.mxu0 0.0
      %1064 = vmatpush1.msra.mxu0 %v1046
      %1065 = vmatprep.subr.mxu0 0.0
      %1066 = vmatpush1.msra.mxu0 %v1047
      %1067 = vmatprep.subr.mxu0 0.0
      %1068 = vmatpush1.msra.mxu0 0.0
      %1069 = vmatprep.subr.mxu0 0.0
      %1070 = vmatpush1.msra.mxu0 0.0
      %1071 = vmatprep.subr.mxu0 0.0
      %1072 = vmatpush1.msra.mxu0 0.0
      %1073 = vmatprep.subr.mxu0 0.0
      %1074 = vmatpush1.msra.mxu0 0.0
      %1075 = vmatprep.subr.mxu0 0.0
      %1076 = vmatpush1.msra.mxu0 0.0
      %1077 = vmatprep.subr.mxu0 0.0
      %1078 = vmatpush1.msra.mxu0 0.0
      %1079 = vmatprep.subr.mxu0 0.0
      %1080 = vmatpush1.msra.mxu0 0.0
      %1081 = vmatprep.subr.mxu0 0.0
      %1082 = vmatpush1.msra.mxu0 0.0
      %1083 = vmatprep.subr.mxu0 0.0
      %1084 = vmatpush1.msra.mxu0 0.0
      %1085 = vmatprep.subr.mxu0 0.0
      %1086 = vmatpush1.msra.mxu0 0.0
      %1087 = vmatprep.subr.mxu0 0.0
      %1088 = vmatpush1.msra.mxu0 0.0
      %1089 = vmatprep.subr.mxu0 0.0
      %1090 = vmatpush1.msra.mxu0 0.0
      %1091 = vmatprep.subr.mxu0 0.0
      %1092 = vmatpush1.msra.mxu0 0.0
      %1093 = vmatprep.subr.mxu0 0.0
      %1094 = vmatpush1.msra.mxu0 0.0
      %1095 = vmatprep.subr.mxu0 0.0
      %1096 = vmatpush1.msra.mxu0 0.0
      %1097 = vmatprep.subr.mxu0 0.0
      %1098 = vmatpush1.msra.mxu0 0.0
      %1099 = vmatprep.subr.mxu0 0.0
      %1100 = vmatpush1.msra.mxu0 0.0
      %1101 = vmatprep.subr.mxu0 0.0
      %1102 = vmatpush1.msra.mxu0 0.0
      %1103 = vmatprep.subr.mxu0 0.0
      %1104 = vmatpush1.msra.mxu0 0.0
      %1105 = vmatprep.subr.mxu0 0.0
      %1106 = vmatpush1.msra.mxu0 0.0
      %1107 = vmatprep.subr.mxu0 0.0
      %1108 = vmatpush1.msra.mxu0 0.0
      %1109 = vmatprep.subr.mxu0 0.0
      %1110 = vmatpush1.msra.mxu0 0.0
      %1111 = vmatprep.subr.mxu0 0.0
      %1112 = vmatpush1.msra.mxu0 0.0
      %1113 = vmatprep.subr.mxu0 0.0
      %1114 = vmatpush1.msra.mxu0 0.0
      %1115 = vmatprep.subr.mxu0 0.0
      %1116 = vmatpush1.msra.mxu0 0.0
      %1117 = vmatprep.subr.mxu0 0.0
      %1118 = vmatpush1.msra.mxu0 0.0
      %1119 = vmatprep.subr.mxu0 0.0
      %1120 = vmatpush1.msra.mxu0 0.0
      %1121 = vmatprep.subr.mxu0 0.0
      %1122 = vmatpush1.msra.mxu0 0.0
      %1123 = vmatprep.mubr.f32.mxu0 0.0
      %1124 = vmatmul.mubr.f32.gmra.mrb[0].mxu0 %v1057
      %v1125 = vpop.f32.mrb[0].mxu0
      %v1126 = vadd.f32 %v1053, %v1125
      %v1127 = vpop.f32.mrb[0].mxu0
      %1128 = vdwg.mxu0
      %1129 = vst [vmem:[%s215] sm:$0xff] %v1126
      %p1130 = scmp.lt.s32.totalorder %s15, 1
      %s1131 = scalar_select %p1130, %s15, 1
      %s1132 = smul.addr %s1131, 8
      %s1133 = scalar_lea.vmem %s4, %s1132
      // Predicated region
      $region37: #{model_builder_forward.5} parent=35 // pred_check
        %p1134 = pneg %p127
      $region38: #{model_builder_forward.5} parent=35 // pred_check_branch
        %1136 = sbr.rel (%p1134) target = $region40
      $region39: #{model_builder_forward.5} parent=35 // pred_region
        _
      $region40: #{model_builder_forward.5} parent=35 // pred_fallthru
        _
    $region36: #{model_builder_forward.5} parent=5 // pred_fallthru
      _
    %p1137 = scmp.le.s32.totalorder 2, %s10
    // Predicated region
    $region41: #{model_builder_forward.5} parent=5 // pred_check
      %p1138 = pneg %p1137
    $region42: #{model_builder_forward.5} parent=5 // pred_check_branch
      %1140 = sbr.rel (%p1138) target = $region44
    $region43: #{model_builder_forward.5} parent=5 // pred_region
      %s1141 = ssub.s32 %s10, 2
      // Predicated region
      $region45: #{model_builder_forward.5} parent=43 // pred_check
        %p1142 = pneg %p133
      $region46: #{model_builder_forward.5} parent=43 // pred_check_branch
        %1144 = sbr.rel (%p1142) target = $region48
      $region47: #{model_builder_forward.5} parent=43 // pred_region
        %p1145 = scmp.lt.s32.totalorder %s16, 1
        %s1146 = scalar_select %p1145, %s16, 1
        %s1147 = smul.addr %s1146, 8
        %s1148 = scalar_lea.vmem %s4, %s1147
      $region48: #{model_builder_forward.5} parent=43 // pred_fallthru
        _
    $region44: #{model_builder_forward.5} parent=5 // pred_fallthru
      _
  $region6: #{model_builder_forward.5} parent=0 // loop_footer
    %s14 = sadd.s32 1, %s10
  $region7: #{model_builder_forward.5} parent=0 // loop_footer_branch
    %9 = sbr.rel target = $region3
  $region8: #{model_builder_forward.5} parent=0 // loop_exit
    _

</llo_original>
